<compile_context>
chip_gen: v7x
topology: tpu7x:2x2x1
jax: 0.10.0
libtpu: 0.0.40
codegen_flags: <defaults>
</compile_context>

<pallas_src>
import math
import numpy as np
import jax
import jax.numpy as jnp
from jax import lax
from jax.experimental import pallas as pl

# --- problem sizes (small, consistent with the module) ---
SEQ = 8            # L
BATCH = 2          # B
D_MODEL = 32
N_HEADS = 4
HEAD_DIM = D_MODEL // N_HEADS
HALF = HEAD_DIM // 2
FFN_DIM = 64
EPS = 1e-5         # nn.LayerNorm default
ROWS = SEQ * BATCH # flattened (seq, batch) rows; row index = l * BATCH + b
NEG_INF = -1e30


def _layer_norm(x, gamma, beta):
    mean = jnp.mean(x, axis=-1, keepdims=True)
    var = jnp.mean((x - mean) ** 2, axis=-1, keepdims=True)
    return (x - mean) * lax.rsqrt(var + EPS) * gamma + beta


def encoder_layer_kernel(x_ref, wqkv_ref, bqkv_ref, wo_ref, w1_ref, w2_ref,
                         rope_ref, bias_ref, vecs_ref, out_ref):
    # Flatten (L, B, D) -> (L*B, D); every row-wise op runs once over 16 rows.
    x = x_ref[...].reshape(ROWS, D_MODEL)

    # Fused [Q | Q_swap | K | K_swap | V] projection: one (16,32)@(32,160) matmul.
    proj = jnp.dot(x, wqkv_ref[...], preferred_element_type=jnp.float32) + bqkv_ref[...]
    q  = proj[:, 0 * D_MODEL:1 * D_MODEL]      # scaled, de-interleaved
    qs = proj[:, 1 * D_MODEL:2 * D_MODEL]      # scaled, halves swapped per head
    k  = proj[:, 2 * D_MODEL:3 * D_MODEL]
    ks = proj[:, 3 * D_MODEL:4 * D_MODEL]
    v  = proj[:, 4 * D_MODEL:5 * D_MODEL]

    # Full-width RoPE: per-head [cos|cos] and [-sin|+sin] tables (precomputed),
    # so the rotation is plain full-width FMAs -- no narrow lane slices.
    cosf = rope_ref[0]                          # (ROWS, D_MODEL)
    sinf = rope_ref[1]
    qr = q * cosf + qs * sinf                   # already carries 1/sqrt(head_dim)
    kr = k * cosf + ks * sinf

    neg_bias = bias_ref[...]                    # 0 for same-batch pairs, -1e30 otherwise

    dn = (((1,), (1,)), ((), ()))               # contract last dims: Q @ K^T
    heads = []
    for h in range(N_HEADS):                    # static unroll over 4 heads
        lo, hi = h * HEAD_DIM, (h + 1) * HEAD_DIM
        s = lax.dot_general(qr[:, lo:hi], kr[:, lo:hi], dn,
                            preferred_element_type=jnp.float32) + neg_bias
        s = s - jnp.max(s, axis=-1, keepdims=True)
        p = jnp.exp(s)
        p = p * pl.reciprocal(jnp.sum(p, axis=-1, keepdims=True), approx=True)
        heads.append(jnp.dot(p, v[:, lo:hi], preferred_element_type=jnp.float32))
    ctx = jnp.concatenate(heads, axis=-1)       # (ROWS, D_MODEL)

    # Packed small vectors.
    vecs = vecs_ref[...]
    bo  = vecs[0:1, :D_MODEL]
    g1  = vecs[1:2, :D_MODEL]
    be1 = vecs[2:3, :D_MODEL]
    g2  = vecs[3:4, :D_MODEL]
    be2 = vecs[4:5, :D_MODEL]
    bf2 = vecs[5:6, :D_MODEL]
    bf1 = vecs[6:7, :FFN_DIM]

    # Single output projection for all heads.
    attn = jnp.dot(ctx, wo_ref[...], preferred_element_type=jnp.float32) + bo
    x1 = _layer_norm(x + attn, g1, be1)

    h1 = jnp.dot(x1, w1_ref[...], preferred_element_type=jnp.float32) + bf1
    h1 = h1 * 0.5 * (1.0 + lax.erf(h1 * (1.0 / math.sqrt(2.0))))   # exact gelu
    f = jnp.dot(h1, w2_ref[...], preferred_element_type=jnp.float32) + bf2

    y = _layer_norm(x1 + f, g2, be2)
    out_ref[...] = y.reshape(SEQ, BATCH, D_MODEL)


def prepare_operands(params, freqs_cos, freqs_sin):
    """One-time packing / permutation of weights and tables into kernel operands."""
    scale = 1.0 / math.sqrt(HEAD_DIM)

    # Per-head de-interleave (even||odd) and swapped (odd||even) row permutations.
    perm, perm_swap = [], []
    for h in range(N_HEADS):
        ev = [h * HEAD_DIM + 2 * i for i in range(HALF)]
        od = [h * HEAD_DIM + 2 * i + 1 for i in range(HALF)]
        perm += ev + od
        perm_swap += od + ev
    perm = np.array(perm)
    perm_swap = np.array(perm_swap)

    wq, bq, wk, bk = params["wq"], params["bq"], params["wk"], params["bk"]
    # Packed projection columns: [Q | Q_swap | K | K_swap | V]; softmax scale folded
    # into the Q-side weights/biases.  (Q.K^T is invariant to the shared feature
    # permutation, V / out_proj stay in original order -> bit-equivalent attention.)
    wqkv = jnp.concatenate([
        wq[perm, :].T * scale,
        wq[perm_swap, :].T * scale,
        wk[perm, :].T,
        wk[perm_swap, :].T,
        params["wv"].T,
    ], axis=1)                                             # (D, 5D)
    bqkv = jnp.concatenate([
        bq[perm] * scale, bq[perm_swap] * scale,
        bk[perm], bk[perm_swap], params["bv"],
    ]).reshape(1, 5 * D_MODEL)

    wo = params["wo"].T                                    # (D, D)
    w1 = params["w1"].T                                    # (D, F)
    w2 = params["w2"].T                                    # (F, D)

    # RoPE tables tiled to full model width and repeated per batch row (row = l*B+b).
    cos_head = jnp.tile(freqs_cos, (1, 2 * N_HEADS))                       # (L, D)
    sin_head = jnp.tile(jnp.concatenate([-freqs_sin, freqs_sin], axis=1),
                        (1, N_HEADS))                                      # (L, D)
    cos_full = jnp.repeat(cos_head, BATCH, axis=0)                         # (L*B, D)
    sin_full = jnp.repeat(sin_head, BATCH, axis=0)
    rope = jnp.stack([cos_full, sin_full], axis=0)                         # (2, L*B, D)

    # Additive attention bias forbidding cross-batch attention in the flattened view.
    rows = np.arange(ROWS)
    same_batch = (rows[:, None] % BATCH) == (rows[None, :] % BATCH)
    attn_bias = jnp.asarray(np.where(same_batch, 0.0, NEG_INF), jnp.float32)

    # Pack all tiny vectors into one (8, 64) operand.
    def pad64(vec):
        return jnp.pad(vec, (0, 64 - vec.shape[0]))

    vecs = jnp.stack([
        pad64(params["bo"]), pad64(params["g1"]), pad64(params["be1"]),
        pad64(params["g2"]), pad64(params["be2"]), pad64(params["bf2"]),
        params["bf1"], jnp.zeros((64,), jnp.float32),
    ], axis=0)                                             # (8, 64)

    return (wqkv, bqkv, wo, w1, w2, rope, attn_bias, vecs)


@jax.jit
def bart_encoder_layer(x_lbd, wqkv, bqkv, wo, w1, w2, rope, attn_bias, vecs):
    """x_lbd: (L, B, D) float32, exactly like the PyTorch module. Returns (L, B, D)."""
    return pl.pallas_call(
        encoder_layer_kernel,
        out_shape=jax.ShapeDtypeStruct((SEQ, BATCH, D_MODEL), jnp.float32),
    )(x_lbd, wqkv, bqkv, wo, w1, w2, rope, attn_bias, vecs)


# ---------------- pure-JAX reference (mirrors the PyTorch code) ----------------
def _ref_rope(x, cos, sin):
    xr = x.reshape(*x.shape[:-1], HALF, 2)
    x1, x2 = xr[..., 0], xr[..., 1]
    c = cos[None, None]
    s = sin[None, None]
    r1 = x1 * c - x2 * s
    r2 = x1 * s + x2 * c
    return jnp.stack((r1, r2), axis=-1).reshape(x.shape)


def _ref_ln(x, g, b):
    m = jnp.mean(x, axis=-1, keepdims=True)
    v = jnp.mean((x - m) ** 2, axis=-1, keepdims=True)
    return (x - m) / jnp.sqrt(v + EPS) * g + b


def ref_forward(x, p, cos, sin):
    L, B, D = x.shape
    q = (x @ p["wq"].T + p["bq"]).reshape(L, B, N_HEADS, HEAD_DIM).transpose(1, 2, 0, 3)
    k = (x @ p["wk"].T + p["bk"]).reshape(L, B, N_HEADS, HEAD_DIM).transpose(1, 2, 0, 3)
    v = (x @ p["wv"].T + p["bv"]).reshape(L, B, N_HEADS, HEAD_DIM).transpose(1, 2, 0, 3)
    q = _ref_rope(q, cos, sin)
    k = _ref_rope(k, cos, sin)
    s = jnp.einsum("bhqd,bhkd->bhqk", q, k) / math.sqrt(HEAD_DIM)
    a = jax.nn.softmax(s, axis=-1)
    o = jnp.einsum("bhqk,bhkd->bhqd", a, v)
    o = o.transpose(0, 2, 1, 3).reshape(B, L, D).transpose(1, 0, 2)
    o = o @ p["wo"].T + p["bo"]
    x1 = _ref_ln(x + o, p["g1"], p["be1"])
    h = x1 @ p["w1"].T + p["bf1"]
    h = h * 0.5 * (1.0 + jax.scipy.special.erf(h / math.sqrt(2.0)))
    f = h @ p["w2"].T + p["bf2"]
    return _ref_ln(x1 + f, p["g2"], p["be2"])


def make_params(key):
    ks = jax.random.split(key, 12)

    def lin(kw, kb, out_f, in_f):
        bound = 1.0 / math.sqrt(in_f)
        w = jax.random.uniform(kw, (out_f, in_f), jnp.float32, -bound, bound)
        b = jax.random.uniform(kb, (out_f,), jnp.float32, -bound, bound)
        return w, b

    wq, bq = lin(ks[0], ks[1], D_MODEL, D_MODEL)
    wk, bk = lin(ks[2], ks[3], D_MODEL, D_MODEL)
    wv, bv = lin(ks[4], ks[5], D_MODEL, D_MODEL)
    wo, bo = lin(ks[6], ks[7], D_MODEL, D_MODEL)
    w1, bf1 = lin(ks[8], ks[9], FFN_DIM, D_MODEL)
    w2, bf2 = lin(ks[10], ks[11], D_MODEL, FFN_DIM)
    return dict(
        wq=wq, bq=bq, wk=wk, bk=bk, wv=wv, bv=bv, wo=wo, bo=bo,
        g1=jnp.ones((D_MODEL,), jnp.float32), be1=jnp.zeros((D_MODEL,), jnp.float32),
        g2=jnp.ones((D_MODEL,), jnp.float32), be2=jnp.zeros((D_MODEL,), jnp.float32),
        w1=w1, bf1=bf1, w2=w2, bf2=bf2,
    )


if __name__ == "__main__":
    key = jax.random.PRNGKey(0)
    k_x, k_p = jax.random.split(key)
    params = make_params(k_p)

    x = jax.random.normal(k_x, (SEQ, BATCH, D_MODEL), jnp.float32)   # (L, B, D)

    # rotary frequency tables, 2-D (L, head_dim // 2) as in the PyTorch call path
    inv_freq = 1.0 / (10000.0 ** (jnp.arange(0, HEAD_DIM, 2, dtype=jnp.float32) / HEAD_DIM))
    t = jnp.arange(SEQ, dtype=jnp.float32)
    freqs = jnp.outer(t, inv_freq)                                   # (L, HALF)
    freqs_cos = jnp.cos(freqs)
    freqs_sin = jnp.sin(freqs)

    ops = prepare_operands(params, freqs_cos, freqs_sin)             # one-time packing
    out = bart_encoder_layer(x, *ops)
    out = jax.block_until_ready(out)

    ref = ref_forward(x, params, freqs_cos, freqs_sin)
    assert out.shape == (SEQ, BATCH, D_MODEL)
    max_err = float(jnp.max(jnp.abs(out - ref)))
    assert jnp.allclose(out, ref, rtol=1e-3, atol=1e-3), max_err

    print("KERNEL_OK")
</pallas_src>

<mosaic_0001>
module attributes {stable_mosaic.version = 11 : i64} {
  func.func @encoder_layer_kernel(%arg0: memref<8x2x32xf32, #tpu.memory_space<vmem>>, %arg1: memref<32x160xf32, #tpu.memory_space<vmem>>, %arg2: memref<1x160xf32, #tpu.memory_space<vmem>>, %arg3: memref<32x32xf32, #tpu.memory_space<vmem>>, %arg4: memref<32x64xf32, #tpu.memory_space<vmem>>, %arg5: memref<64x32xf32, #tpu.memory_space<vmem>>, %arg6: memref<2x16x32xf32, #tpu.memory_space<vmem>>, %arg7: memref<16x16xf32, #tpu.memory_space<vmem>>, %arg8: memref<8x64xf32, #tpu.memory_space<vmem>>, %arg9: memref<8x2x32xf32, #tpu.memory_space<vmem>>) attributes {dimension_semantics = [], scalar_prefetch = 0 : i64, scratch_operands = 0 : i64, tpu.core_type = #tpu.core_type<tc>} {
    %c0 = arith.constant 0 : index
    %c0_0 = arith.constant 0 : index
    %c0_1 = arith.constant 0 : index
    %0 = vector.load %arg0[%c0, %c0_0, %c0_1] : memref<8x2x32xf32, #tpu.memory_space<vmem>>, vector<8x2x32xf32>
    %1 = vector.shape_cast %0 : vector<8x2x32xf32> to vector<16x32xf32>
    %c0_2 = arith.constant 0 : index
    %c0_3 = arith.constant 0 : index
    %2 = vector.load %arg1[%c0_2, %c0_3] : memref<32x160xf32, #tpu.memory_space<vmem>>, vector<32x160xf32>
    %cst = arith.constant dense<0.000000e+00> : vector<16x160xf32>
    %3 = tpu.matmul %1, %2, %cst {dimension_numbers = #tpu.dot_dimension_numbers<[1], [0], [0], [1], [0, 0, 1, 1], [], []>} : vector<16x32xf32>, vector<32x160xf32>, vector<16x160xf32> -> vector<16x160xf32>
    %c0_4 = arith.constant 0 : index
    %c0_5 = arith.constant 0 : index
    %4 = vector.load %arg2[%c0_4, %c0_5] : memref<1x160xf32, #tpu.memory_space<vmem>>, vector<1x160xf32>
    %5 = vector.broadcast %4 : vector<1x160xf32> to vector<16x160xf32>
    %6 = arith.addf %3, %5 : vector<16x160xf32>
    %7 = vector.extract_strided_slice %6 {offsets = [0, 0], sizes = [16, 32], strides = [1, 1]} : vector<16x160xf32> to vector<16x32xf32>
    %8 = vector.extract_strided_slice %6 {offsets = [0, 32], sizes = [16, 32], strides = [1, 1]} : vector<16x160xf32> to vector<16x32xf32>
    %9 = vector.extract_strided_slice %6 {offsets = [0, 64], sizes = [16, 32], strides = [1, 1]} : vector<16x160xf32> to vector<16x32xf32>
    %10 = vector.extract_strided_slice %6 {offsets = [0, 96], sizes = [16, 32], strides = [1, 1]} : vector<16x160xf32> to vector<16x32xf32>
    %11 = vector.extract_strided_slice %6 {offsets = [0, 128], sizes = [16, 32], strides = [1, 1]} : vector<16x160xf32> to vector<16x32xf32>
    %c0_6 = arith.constant 0 : index
    %c0_7 = arith.constant 0 : index
    %c0_8 = arith.constant 0 : index
    %12 = vector.load %arg6[%c0_6, %c0_7, %c0_8] : memref<2x16x32xf32, #tpu.memory_space<vmem>>, vector<1x16x32xf32>
    %13 = vector.shape_cast %12 : vector<1x16x32xf32> to vector<16x32xf32>
    %c1 = arith.constant 1 : index
    %c0_9 = arith.constant 0 : index
    %c0_10 = arith.constant 0 : index
    %14 = vector.load %arg6[%c1, %c0_9, %c0_10] : memref<2x16x32xf32, #tpu.memory_space<vmem>>, vector<1x16x32xf32>
    %15 = vector.shape_cast %14 : vector<1x16x32xf32> to vector<16x32xf32>
    %16 = arith.mulf %7, %13 : vector<16x32xf32>
    %17 = arith.mulf %8, %15 : vector<16x32xf32>
    %18 = arith.addf %16, %17 : vector<16x32xf32>
    %19 = arith.mulf %9, %13 : vector<16x32xf32>
    %20 = arith.mulf %10, %15 : vector<16x32xf32>
    %21 = arith.addf %19, %20 : vector<16x32xf32>
    %c0_11 = arith.constant 0 : index
    %c0_12 = arith.constant 0 : index
    %22 = vector.load %arg7[%c0_11, %c0_12] : memref<16x16xf32, #tpu.memory_space<vmem>>, vector<16x16xf32>
    %23 = vector.extract_strided_slice %18 {offsets = [0, 0], sizes = [16, 8], strides = [1, 1]} : vector<16x32xf32> to vector<16x8xf32>
    %24 = vector.extract_strided_slice %21 {offsets = [0, 0], sizes = [16, 8], strides = [1, 1]} : vector<16x32xf32> to vector<16x8xf32>
    %cst_13 = arith.constant dense<0.000000e+00> : vector<16x16xf32>
    %25 = tpu.matmul %23, %24, %cst_13 {dimension_numbers = #tpu.dot_dimension_numbers<[1], [1], [0], [0], [0, 0, 1, 0], [], []>} : vector<16x8xf32>, vector<16x8xf32>, vector<16x16xf32> -> vector<16x16xf32>
    %26 = arith.addf %25, %22 : vector<16x16xf32>
    %cst_14 = arith.constant dense<0xFF800000> : vector<16xf32>
    %27 = vector.multi_reduction <maximumf>, %26, %cst_14 [1] : vector<16x16xf32> to vector<16xf32>
    %28 = vector.shape_cast %27 : vector<16xf32> to vector<16x1xf32>
    %29 = vector.broadcast %28 : vector<16x1xf32> to vector<16x16xf32>
    %30 = arith.subf %26, %29 : vector<16x16xf32>
    %31 = math.exp %30 : vector<16x16xf32>
    %cst_15 = arith.constant dense<0.000000e+00> : vector<16xf32>
    %32 = vector.multi_reduction <add>, %31, %cst_15 [1] : vector<16x16xf32> to vector<16xf32>
    %33 = vector.shape_cast %32 : vector<16xf32> to vector<16x1xf32>
    %34 = tpu.reciprocal %33 {approx = true} : vector<16x1xf32> -> vector<16x1xf32>
    %35 = vector.broadcast %34 : vector<16x1xf32> to vector<16x16xf32>
    %36 = arith.mulf %31, %35 : vector<16x16xf32>
    %37 = vector.extract_strided_slice %11 {offsets = [0, 0], sizes = [16, 8], strides = [1, 1]} : vector<16x32xf32> to vector<16x8xf32>
    %cst_16 = arith.constant dense<0.000000e+00> : vector<16x8xf32>
    %38 = tpu.matmul %36, %37, %cst_16 {dimension_numbers = #tpu.dot_dimension_numbers<[1], [0], [0], [1], [0, 0, 1, 1], [], []>} : vector<16x16xf32>, vector<16x8xf32>, vector<16x8xf32> -> vector<16x8xf32>
    %39 = vector.extract_strided_slice %18 {offsets = [0, 8], sizes = [16, 8], strides = [1, 1]} : vector<16x32xf32> to vector<16x8xf32>
    %40 = vector.extract_strided_slice %21 {offsets = [0, 8], sizes = [16, 8], strides = [1, 1]} : vector<16x32xf32> to vector<16x8xf32>
    %cst_17 = arith.constant dense<0.000000e+00> : vector<16x16xf32>
    %41 = tpu.matmul %39, %40, %cst_17 {dimension_numbers = #tpu.dot_dimension_numbers<[1], [1], [0], [0], [0, 0, 1, 0], [], []>} : vector<16x8xf32>, vector<16x8xf32>, vector<16x16xf32> -> vector<16x16xf32>
    %42 = arith.addf %41, %22 : vector<16x16xf32>
    %cst_18 = arith.constant dense<0xFF800000> : vector<16xf32>
    %43 = vector.multi_reduction <maximumf>, %42, %cst_18 [1] : vector<16x16xf32> to vector<16xf32>
    %44 = vector.shape_cast %43 : vector<16xf32> to vector<16x1xf32>
    %45 = vector.broadcast %44 : vector<16x1xf32> to vector<16x16xf32>
    %46 = arith.subf %42, %45 : vector<16x16xf32>
    %47 = math.exp %46 : vector<16x16xf32>
    %cst_19 = arith.constant dense<0.000000e+00> : vector<16xf32>
    %48 = vector.multi_reduction <add>, %47, %cst_19 [1] : vector<16x16xf32> to vector<16xf32>
    %49 = vector.shape_cast %48 : vector<16xf32> to vector<16x1xf32>
    %50 = tpu.reciprocal %49 {approx = true} : vector<16x1xf32> -> vector<16x1xf32>
    %51 = vector.broadcast %50 : vector<16x1xf32> to vector<16x16xf32>
    %52 = arith.mulf %47, %51 : vector<16x16xf32>
    %53 = vector.extract_strided_slice %11 {offsets = [0, 8], sizes = [16, 8], strides = [1, 1]} : vector<16x32xf32> to vector<16x8xf32>
    %cst_20 = arith.constant dense<0.000000e+00> : vector<16x8xf32>
    %54 = tpu.matmul %52, %53, %cst_20 {dimension_numbers = #tpu.dot_dimension_numbers<[1], [0], [0], [1], [0, 0, 1, 1], [], []>} : vector<16x16xf32>, vector<16x8xf32>, vector<16x8xf32> -> vector<16x8xf32>
    %55 = vector.extract_strided_slice %18 {offsets = [0, 16], sizes = [16, 8], strides = [1, 1]} : vector<16x32xf32> to vector<16x8xf32>
    %56 = vector.extract_strided_slice %21 {offsets = [0, 16], sizes = [16, 8], strides = [1, 1]} : vector<16x32xf32> to vector<16x8xf32>
    %cst_21 = arith.constant dense<0.000000e+00> : vector<16x16xf32>
    %57 = tpu.matmul %55, %56, %cst_21 {dimension_numbers = #tpu.dot_dimension_numbers<[1], [1], [0], [0], [0, 0, 1, 0], [], []>} : vector<16x8xf32>, vector<16x8xf32>, vector<16x16xf32> -> vector<16x16xf32>
    %58 = arith.addf %57, %22 : vector<16x16xf32>
    %cst_22 = arith.constant dense<0xFF800000> : vector<16xf32>
    %59 = vector.multi_reduction <maximumf>, %58, %cst_22 [1] : vector<16x16xf32> to vector<16xf32>
    %60 = vector.shape_cast %59 : vector<16xf32> to vector<16x1xf32>
    %61 = vector.broadcast %60 : vector<16x1xf32> to vector<16x16xf32>
    %62 = arith.subf %58, %61 : vector<16x16xf32>
    %63 = math.exp %62 : vector<16x16xf32>
    %cst_23 = arith.constant dense<0.000000e+00> : vector<16xf32>
    %64 = vector.multi_reduction <add>, %63, %cst_23 [1] : vector<16x16xf32> to vector<16xf32>
    %65 = vector.shape_cast %64 : vector<16xf32> to vector<16x1xf32>
    %66 = tpu.reciprocal %65 {approx = true} : vector<16x1xf32> -> vector<16x1xf32>
    %67 = vector.broadcast %66 : vector<16x1xf32> to vector<16x16xf32>
    %68 = arith.mulf %63, %67 : vector<16x16xf32>
    %69 = vector.extract_strided_slice %11 {offsets = [0, 16], sizes = [16, 8], strides = [1, 1]} : vector<16x32xf32> to vector<16x8xf32>
    %cst_24 = arith.constant dense<0.000000e+00> : vector<16x8xf32>
    %70 = tpu.matmul %68, %69, %cst_24 {dimension_numbers = #tpu.dot_dimension_numbers<[1], [0], [0], [1], [0, 0, 1, 1], [], []>} : vector<16x16xf32>, vector<16x8xf32>, vector<16x8xf32> -> vector<16x8xf32>
    %71 = vector.extract_strided_slice %18 {offsets = [0, 24], sizes = [16, 8], strides = [1, 1]} : vector<16x32xf32> to vector<16x8xf32>
    %72 = vector.extract_strided_slice %21 {offsets = [0, 24], sizes = [16, 8], strides = [1, 1]} : vector<16x32xf32> to vector<16x8xf32>
    %cst_25 = arith.constant dense<0.000000e+00> : vector<16x16xf32>
    %73 = tpu.matmul %71, %72, %cst_25 {dimension_numbers = #tpu.dot_dimension_numbers<[1], [1], [0], [0], [0, 0, 1, 0], [], []>} : vector<16x8xf32>, vector<16x8xf32>, vector<16x16xf32> -> vector<16x16xf32>
    %74 = arith.addf %73, %22 : vector<16x16xf32>
    %cst_26 = arith.constant dense<0xFF800000> : vector<16xf32>
    %75 = vector.multi_reduction <maximumf>, %74, %cst_26 [1] : vector<16x16xf32> to vector<16xf32>
    %76 = vector.shape_cast %75 : vector<16xf32> to vector<16x1xf32>
    %77 = vector.broadcast %76 : vector<16x1xf32> to vector<16x16xf32>
    %78 = arith.subf %74, %77 : vector<16x16xf32>
    %79 = math.exp %78 : vector<16x16xf32>
    %cst_27 = arith.constant dense<0.000000e+00> : vector<16xf32>
    %80 = vector.multi_reduction <add>, %79, %cst_27 [1] : vector<16x16xf32> to vector<16xf32>
    %81 = vector.shape_cast %80 : vector<16xf32> to vector<16x1xf32>
    %82 = tpu.reciprocal %81 {approx = true} : vector<16x1xf32> -> vector<16x1xf32>
    %83 = vector.broadcast %82 : vector<16x1xf32> to vector<16x16xf32>
    %84 = arith.mulf %79, %83 : vector<16x16xf32>
    %85 = vector.extract_strided_slice %11 {offsets = [0, 24], sizes = [16, 8], strides = [1, 1]} : vector<16x32xf32> to vector<16x8xf32>
    %cst_28 = arith.constant dense<0.000000e+00> : vector<16x8xf32>
    %86 = tpu.matmul %84, %85, %cst_28 {dimension_numbers = #tpu.dot_dimension_numbers<[1], [0], [0], [1], [0, 0, 1, 1], [], []>} : vector<16x16xf32>, vector<16x8xf32>, vector<16x8xf32> -> vector<16x8xf32>
    %87 = tpu.concatenate %38, %54, %70, %86 in 1 : vector<16x8xf32>, vector<16x8xf32>, vector<16x8xf32>, vector<16x8xf32> -> vector<16x32xf32>
    %c0_29 = arith.constant 0 : index
    %c0_30 = arith.constant 0 : index
    %88 = vector.load %arg8[%c0_29, %c0_30] : memref<8x64xf32, #tpu.memory_space<vmem>>, vector<8x64xf32>
    %89 = vector.extract_strided_slice %88 {offsets = [0, 0], sizes = [1, 32], strides = [1, 1]} : vector<8x64xf32> to vector<1x32xf32>
    %90 = vector.extract_strided_slice %88 {offsets = [1, 0], sizes = [1, 32], strides = [1, 1]} : vector<8x64xf32> to vector<1x32xf32>
    %91 = vector.extract_strided_slice %88 {offsets = [2, 0], sizes = [1, 32], strides = [1, 1]} : vector<8x64xf32> to vector<1x32xf32>
    %92 = vector.extract_strided_slice %88 {offsets = [3, 0], sizes = [1, 32], strides = [1, 1]} : vector<8x64xf32> to vector<1x32xf32>
    %93 = vector.extract_strided_slice %88 {offsets = [4, 0], sizes = [1, 32], strides = [1, 1]} : vector<8x64xf32> to vector<1x32xf32>
    %94 = vector.extract_strided_slice %88 {offsets = [5, 0], sizes = [1, 32], strides = [1, 1]} : vector<8x64xf32> to vector<1x32xf32>
    %95 = vector.extract_strided_slice %88 {offsets = [6, 0], sizes = [1, 64], strides = [1, 1]} : vector<8x64xf32> to vector<1x64xf32>
    %c0_31 = arith.constant 0 : index
    %c0_32 = arith.constant 0 : index
    %96 = vector.load %arg3[%c0_31, %c0_32] : memref<32x32xf32, #tpu.memory_space<vmem>>, vector<32x32xf32>
    %cst_33 = arith.constant dense<0.000000e+00> : vector<16x32xf32>
    %97 = tpu.matmul %87, %96, %cst_33 {dimension_numbers = #tpu.dot_dimension_numbers<[1], [0], [0], [1], [0, 0, 1, 1], [], []>} : vector<16x32xf32>, vector<32x32xf32>, vector<16x32xf32> -> vector<16x32xf32>
    %98 = vector.broadcast %89 : vector<1x32xf32> to vector<16x32xf32>
    %99 = arith.addf %97, %98 : vector<16x32xf32>
    %100 = arith.addf %1, %99 : vector<16x32xf32>
    %cst_34 = arith.constant dense<0.000000e+00> : vector<16xf32>
    %101 = vector.multi_reduction <add>, %100, %cst_34 [1] : vector<16x32xf32> to vector<16xf32>
    %102 = vector.shape_cast %101 : vector<16xf32> to vector<16x1xf32>
    %cst_35 = arith.constant 3.200000e+01 : f32
    %103 = vector.broadcast %cst_35 : f32 to vector<16x1xf32>
    %104 = arith.divf %102, %103 : vector<16x1xf32>
    %105 = vector.broadcast %104 : vector<16x1xf32> to vector<16x32xf32>
    %106 = arith.subf %100, %105 : vector<16x32xf32>
    %107 = arith.mulf %106, %106 : vector<16x32xf32>
    %cst_36 = arith.constant dense<0.000000e+00> : vector<16xf32>
    %108 = vector.multi_reduction <add>, %107, %cst_36 [1] : vector<16x32xf32> to vector<16xf32>
    %109 = vector.shape_cast %108 : vector<16xf32> to vector<16x1xf32>
    %cst_37 = arith.constant 3.200000e+01 : f32
    %110 = vector.broadcast %cst_37 : f32 to vector<16x1xf32>
    %111 = arith.divf %109, %110 : vector<16x1xf32>
    %112 = vector.broadcast %104 : vector<16x1xf32> to vector<16x32xf32>
    %113 = arith.subf %100, %112 : vector<16x32xf32>
    %cst_38 = arith.constant 9.99999974E-6 : f32
    %114 = vector.broadcast %cst_38 : f32 to vector<16x1xf32>
    %115 = arith.addf %111, %114 : vector<16x1xf32>
    %116 = math.rsqrt %115 : vector<16x1xf32>
    %117 = vector.broadcast %116 : vector<16x1xf32> to vector<16x32xf32>
    %118 = arith.mulf %113, %117 : vector<16x32xf32>
    %119 = vector.broadcast %90 : vector<1x32xf32> to vector<16x32xf32>
    %120 = arith.mulf %118, %119 : vector<16x32xf32>
    %121 = vector.broadcast %91 : vector<1x32xf32> to vector<16x32xf32>
    %122 = arith.addf %120, %121 : vector<16x32xf32>
    %c0_39 = arith.constant 0 : index
    %c0_40 = arith.constant 0 : index
    %123 = vector.load %arg4[%c0_39, %c0_40] : memref<32x64xf32, #tpu.memory_space<vmem>>, vector<32x64xf32>
    %cst_41 = arith.constant dense<0.000000e+00> : vector<16x64xf32>
    %124 = tpu.matmul %122, %123, %cst_41 {dimension_numbers = #tpu.dot_dimension_numbers<[1], [0], [0], [1], [0, 0, 1, 1], [], []>} : vector<16x32xf32>, vector<32x64xf32>, vector<16x64xf32> -> vector<16x64xf32>
    %125 = vector.broadcast %95 : vector<1x64xf32> to vector<16x64xf32>
    %126 = arith.addf %124, %125 : vector<16x64xf32>
    %cst_42 = arith.constant 5.000000e-01 : f32
    %127 = vector.broadcast %cst_42 : f32 to vector<16x64xf32>
    %128 = arith.mulf %126, %127 : vector<16x64xf32>
    %cst_43 = arith.constant 0.707106769 : f32
    %129 = vector.broadcast %cst_43 : f32 to vector<16x64xf32>
    %130 = arith.mulf %126, %129 : vector<16x64xf32>
    %131 = math.erf %130 : vector<16x64xf32>
    %cst_44 = arith.constant 1.000000e+00 : f32
    %132 = vector.broadcast %cst_44 : f32 to vector<16x64xf32>
    %133 = arith.addf %132, %131 : vector<16x64xf32>
    %134 = arith.mulf %128, %133 : vector<16x64xf32>
    %c0_45 = arith.constant 0 : index
    %c0_46 = arith.constant 0 : index
    %135 = vector.load %arg5[%c0_45, %c0_46] : memref<64x32xf32, #tpu.memory_space<vmem>>, vector<64x32xf32>
    %cst_47 = arith.constant dense<0.000000e+00> : vector<16x32xf32>
    %136 = tpu.matmul %134, %135, %cst_47 {dimension_numbers = #tpu.dot_dimension_numbers<[1], [0], [0], [1], [0, 0, 1, 1], [], []>} : vector<16x64xf32>, vector<64x32xf32>, vector<16x32xf32> -> vector<16x32xf32>
    %137 = vector.broadcast %94 : vector<1x32xf32> to vector<16x32xf32>
    %138 = arith.addf %136, %137 : vector<16x32xf32>
    %139 = arith.addf %122, %138 : vector<16x32xf32>
    %cst_48 = arith.constant dense<0.000000e+00> : vector<16xf32>
    %140 = vector.multi_reduction <add>, %139, %cst_48 [1] : vector<16x32xf32> to vector<16xf32>
    %141 = vector.shape_cast %140 : vector<16xf32> to vector<16x1xf32>
    %cst_49 = arith.constant 3.200000e+01 : f32
    %142 = vector.broadcast %cst_49 : f32 to vector<16x1xf32>
    %143 = arith.divf %141, %142 : vector<16x1xf32>
    %144 = vector.broadcast %143 : vector<16x1xf32> to vector<16x32xf32>
    %145 = arith.subf %139, %144 : vector<16x32xf32>
    %146 = arith.mulf %145, %145 : vector<16x32xf32>
    %cst_50 = arith.constant dense<0.000000e+00> : vector<16xf32>
    %147 = vector.multi_reduction <add>, %146, %cst_50 [1] : vector<16x32xf32> to vector<16xf32>
    %148 = vector.shape_cast %147 : vector<16xf32> to vector<16x1xf32>
    %cst_51 = arith.constant 3.200000e+01 : f32
    %149 = vector.broadcast %cst_51 : f32 to vector<16x1xf32>
    %150 = arith.divf %148, %149 : vector<16x1xf32>
    %151 = vector.broadcast %143 : vector<16x1xf32> to vector<16x32xf32>
    %152 = arith.subf %139, %151 : vector<16x32xf32>
    %cst_52 = arith.constant 9.99999974E-6 : f32
    %153 = vector.broadcast %cst_52 : f32 to vector<16x1xf32>
    %154 = arith.addf %150, %153 : vector<16x1xf32>
    %155 = math.rsqrt %154 : vector<16x1xf32>
    %156 = vector.broadcast %155 : vector<16x1xf32> to vector<16x32xf32>
    %157 = arith.mulf %152, %156 : vector<16x32xf32>
    %158 = vector.broadcast %92 : vector<1x32xf32> to vector<16x32xf32>
    %159 = arith.mulf %157, %158 : vector<16x32xf32>
    %160 = vector.broadcast %93 : vector<1x32xf32> to vector<16x32xf32>
    %161 = arith.addf %159, %160 : vector<16x32xf32>
    %162 = vector.shape_cast %161 : vector<16x32xf32> to vector<8x2x32xf32>
    %c0_53 = arith.constant 0 : index
    %c0_54 = arith.constant 0 : index
    %c0_55 = arith.constant 0 : index
    %163 = vector.load %arg9[%c0_53, %c0_54, %c0_55] : memref<8x2x32xf32, #tpu.memory_space<vmem>>, vector<8x2x32xf32>
    tpu.vector_store %arg9[%c0_53, %c0_54, %c0_55], %162 {strides = array<i32>} : memref<8x2x32xf32, #tpu.memory_space<vmem>>, vector<8x2x32xf32>,
    return
  }
}

</mosaic_0001>

<llo_original>
// kernel: bart_encoder_layer.1
$region0: #{bart_encoder_layer.1}
  #allocation0 [shape = 'u32[]', space=smem, size = 0x4, offset = 0x4, fixed_abs, tag = 'smem constant byte address 0x4 - core index']
  #allocation1 [shape = 'u32[144,128]{1,0:T(1,128)}', space=vmem, size = 0x12000, scoped, tag = 'internal scratch']
  %s0 = inlined_call_operand.hbm [shape: f32[8,2,32], index: 0, kind: input, shape index: {}]
  %s1 = inlined_call_operand.vmem [shape: f32[32,160], index: 1, kind: input, shape index: {}]
  %s2 = inlined_call_operand.vmem [shape: f32[1,160], index: 2, kind: input, shape index: {}]
  %s3 = inlined_call_operand.vmem [shape: f32[32,32], index: 3, kind: input, shape index: {}]
  %s4 = inlined_call_operand.hbm [shape: f32[32,64], index: 4, kind: input, shape index: {}]
  %s5 = inlined_call_operand.vmem [shape: f32[64,32], index: 5, kind: input, shape index: {}]
  %s6 = inlined_call_operand.hbm [shape: f32[2,16,32], index: 6, kind: input, shape index: {}]
  %s7 = inlined_call_operand.vmem [shape: f32[16,16], index: 7, kind: input, shape index: {}]
  %s8 = inlined_call_operand.vmem [shape: f32[8,64], index: 8, kind: input, shape index: {}]
  %s9 = inlined_call_operand.hbm [shape: f32[8,2,32], index: 9, kind: output, shape index: {}]
  %s10 = sld [smem:[#allocation0]]
  $region58: #{bart_encoder_layer.1} parent=0
    _
  %s12 = ssub.s32 1, %s10
  %s13 = scalar_select 0, %s12, %s10
  $region1: #{bart_encoder_layer.1} parent=0
    #allocation2 [shape = 'u8[8192]{0}', space=vmem, size = 0x2000, scoped, tag = 'input window, operand 0, single buffered']
    #allocation3 [shape = 's32[1]{0}', space=sflag, size = 0x4, scoped, tag = 'scoped memory for bart_encoder_layer.1']
    #allocation4 [shape = 's32[1]{0}', space=sflag, size = 0x4, scoped, tag = 'scoped memory for bart_encoder_layer.1']
    #allocation5 [shape = 'u8[16384]{0}', space=vmem, size = 0x4000, scoped, tag = 'input window, operand 4, single buffered']
    #allocation6 [shape = 's32[1]{0}', space=sflag, size = 0x4, scoped, tag = 'scoped memory for bart_encoder_layer.1']
    #allocation7 [shape = 'u8[16384]{0}', space=vmem, size = 0x4000, scoped, tag = 'input window, operand 6, single buffered']
    #allocation8 [shape = 'u8[8192]{0}', space=vmem, size = 0x2000, scoped, tag = 'output window, operand 0, single buffered']
    %14 = vsyncpa [#allocation3], 0
    %15 = vsyncpa [#allocation6], 0
    %16 = vsyncpa [#allocation4], 0
    // Predicated region
    $region2: #{bart_encoder_layer.1} parent=1 // pred_check
      _
    $region3: #{bart_encoder_layer.1} parent=1 // pred_check_branch
      %18 = sbr.rel (0) target = $region5
    $region4: #{bart_encoder_layer.1} parent=1 // pred_region
      %s20 = ssub.s32 256, 256
      %21 = vsyncadd [#allocation3], %s20
      %s22 = sshll.u32 [#allocation2], 4
      %s23 = int_to_ptr.vmem [resolvable:$true] %s22
      %28 = dma.hbm_to_vmem [thread:$0]  %s0, 256, %s23, [#allocation3], 32, 32, 2
    $region5: #{bart_encoder_layer.1} parent=1 // pred_fallthru
      _
    // Predicated region
    $region6: #{bart_encoder_layer.1} parent=1 // pred_check
      _
    $region7: #{bart_encoder_layer.1} parent=1 // pred_check_branch
      %30 = sbr.rel (0) target = $region9
    $region8: #{bart_encoder_layer.1} parent=1 // pred_region
      _
    $region9: #{bart_encoder_layer.1} parent=1 // pred_fallthru
      _
    // Predicated region
    $region10: #{bart_encoder_layer.1} parent=1 // pred_check
      _
    $region11: #{bart_encoder_layer.1} parent=1 // pred_check_branch
      %32 = sbr.rel (0) target = $region13
    $region12: #{bart_encoder_layer.1} parent=1 // pred_region
      _
    $region13: #{bart_encoder_layer.1} parent=1 // pred_fallthru
      _
    // Predicated region
    $region14: #{bart_encoder_layer.1} parent=1 // pred_check
      _
    $region15: #{bart_encoder_layer.1} parent=1 // pred_check_branch
      %34 = sbr.rel (0) target = $region17
    $region16: #{bart_encoder_layer.1} parent=1 // pred_region
      _
    $region17: #{bart_encoder_layer.1} parent=1 // pred_fallthru
      _
    // Predicated region
    $region18: #{bart_encoder_layer.1} parent=1 // pred_check
      _
    $region19: #{bart_encoder_layer.1} parent=1 // pred_check_branch
      %36 = sbr.rel (0) target = $region21
    $region20: #{bart_encoder_layer.1} parent=1 // pred_region
      %s38 = ssub.s32 512, 512
      %39 = vsyncadd [#allocation6], %s38
      %s40 = sshll.u32 [#allocation5], 4
      %s41 = int_to_ptr.vmem [resolvable:$true] %s40
      %46 = dma.hbm_to_vmem [thread:$0]  %s4, 512, %s41, [#allocation6], 128, 128, 8
    $region21: #{bart_encoder_layer.1} parent=1 // pred_fallthru
      _
    // Predicated region
    $region22: #{bart_encoder_layer.1} parent=1 // pred_check
      _
    $region23: #{bart_encoder_layer.1} parent=1 // pred_check_branch
      %48 = sbr.rel (0) target = $region25
    $region24: #{bart_encoder_layer.1} parent=1 // pred_region
      _
    $region25: #{bart_encoder_layer.1} parent=1 // pred_fallthru
      _
    // Predicated region
    $region26: #{bart_encoder_layer.1} parent=1 // pred_check
      _
    $region27: #{bart_encoder_layer.1} parent=1 // pred_check_branch
      %50 = sbr.rel (0) target = $region29
    $region28: #{bart_encoder_layer.1} parent=1 // pred_region
      %s52 = ssub.s32 512, 512
      %53 = vsyncadd [#allocation6], %s52
      %s54 = sshll.u32 [#allocation7], 4
      %s55 = int_to_ptr.vmem [resolvable:$true] %s54
      %60 = dma.hbm_to_vmem [thread:$0]  %s6, 512, %s55, [#allocation6], 128, 128, 8
    $region29: #{bart_encoder_layer.1} parent=1 // pred_fallthru
      _
    // Predicated region
    $region30: #{bart_encoder_layer.1} parent=1 // pred_check
      _
    $region31: #{bart_encoder_layer.1} parent=1 // pred_check_branch
      %62 = sbr.rel (0) target = $region33
    $region32: #{bart_encoder_layer.1} parent=1 // pred_region
      _
    $region33: #{bart_encoder_layer.1} parent=1 // pred_fallthru
      _
    // Predicated region
    $region34: #{bart_encoder_layer.1} parent=1 // pred_check
      _
    $region35: #{bart_encoder_layer.1} parent=1 // pred_check_branch
      %64 = sbr.rel (0) target = $region37
    $region36: #{bart_encoder_layer.1} parent=1 // pred_region
      _
    $region37: #{bart_encoder_layer.1} parent=1 // pred_fallthru
      _
    // Predicated region
    $region38: #{bart_encoder_layer.1} parent=1 // pred_check
      _
    $region39: #{bart_encoder_layer.1} parent=1 // pred_check_branch
      %66 = sbr.rel (0) target = $region41
    $region40: #{bart_encoder_layer.1} parent=1 // pred_region
      %67 = dma.done [#allocation3], 256
    $region41: #{bart_encoder_layer.1} parent=1 // pred_fallthru
      _
    // Predicated region
    $region42: #{bart_encoder_layer.1} parent=1 // pred_check
      _
    $region43: #{bart_encoder_layer.1} parent=1 // pred_check_branch
      %69 = sbr.rel (0) target = $region45
    $region44: #{bart_encoder_layer.1} parent=1 // pred_region
      %70 = dma.done [#allocation6], 512
    $region45: #{bart_encoder_layer.1} parent=1 // pred_fallthru
      _
    // Predicated region
    $region46: #{bart_encoder_layer.1} parent=1 // pred_check
      _
    $region47: #{bart_encoder_layer.1} parent=1 // pred_check_branch
      %72 = sbr.rel (0) target = $region49
    $region48: #{bart_encoder_layer.1} parent=1 // pred_region
      %73 = dma.done [#allocation6], 512
    $region49: #{bart_encoder_layer.1} parent=1 // pred_fallthru
      _
    %v74 = vld [vmem:[#allocation2] sm:$0x3]
    %v75 = vld [vmem:[#allocation2 + $0x2] sm:$0x3]
    %v76 = vld [vmem:[#allocation2 + $0x4] sm:$0x3]
    %v77 = vld [vmem:[#allocation2 + $0x6] sm:$0x3]
    %v78 = vld [vmem:[#allocation2 + $0x8] sm:$0x3]
    %v79 = vld [vmem:[#allocation2 + $0xa] sm:$0x3]
    %v80 = vld [vmem:[#allocation2 + $0xc] sm:$0x3]
    %v81 = vld [vmem:[#allocation2 + $0xe] sm:$0x3]
    %v82 = vld [vmem:[%s1] sm:$0xff]
    %v83 = vld [vmem:[%s1 + $0x8] sm:$0xff]
    %v84 = vld [vmem:[%s1 + $0x10] sm:$0xff]
    %v85 = vld [vmem:[%s1 + $0x18] sm:$0xff]
    %v86 = vld [vmem:[%s1 + $0x20] sm:$0xff]
    %v87 = vld [vmem:[%s1 + $0x28] sm:$0xff]
    %v88 = vld [vmem:[%s1 + $0x30] sm:$0xff]
    %v89 = vld [vmem:[%s1 + $0x38] sm:$0xff]
    %v90 = vld [vmem:[%s2] sm:$0x3]
    %v92 = vlaneseq
    %v93 = vshrl.u32 %v92, 7
    %v94 = vsub.s32 0, %v93
    %v95 = vrot.slane %v90, %v94
    %v96 = vlaneseq
    %v97 = vshrl.u32 %v96, 7
    %v98 = vsub.s32 1, %v97
    %v99 = vrot.slane %v90, %v98
    %v110 = vcombine.low %v74, %v75
    %v111 = vcombine.low %v76, %v77
    %v113 = vunpack.c.l.s4 1983009808
    %v114 = vunpack.c.0.s8 %v113
    %v115 = vlaneseq
    %v116 = vshrl.u32 %v115, 7
    %v117 = vsub.s32 %v114, %v116
    %v118 = vrot.slane %v110, %v117
    %v120 = vunpack.c.l.s4 1983009808
    %v121 = vunpack.c.0.s8 %v120
    %v122 = vlaneseq
    %v123 = vshrl.u32 %v122, 7
    %v124 = vsub.s32 %v121, %v123
    %v125 = vrot.slane %v111, %v124
    %v126 = vcombine.low %v118, %v125
    %v127 = vcombine.low %v78, %v79
    %v128 = vcombine.low %v80, %v81
    %v130 = vunpack.c.l.s4 1983009808
    %v131 = vunpack.c.0.s8 %v130
    %v132 = vlaneseq
    %v133 = vshrl.u32 %v132, 7
    %v134 = vsub.s32 %v131, %v133
    %v135 = vrot.slane %v127, %v134
    %v137 = vunpack.c.l.s4 1983009808
    %v138 = vunpack.c.0.s8 %v137
    %v139 = vlaneseq
    %v140 = vshrl.u32 %v139, 7
    %v141 = vsub.s32 %v138, %v140
    %v142 = vrot.slane %v128, %v141
    %v143 = vcombine.low %v135, %v142
    %vm144 = vcmask 261120
    %v145 = vsel %vm144, %v126, 0
    %v147 = vsel %vm144, %v143, 0
    %149 = vmatprep.subr.mxu0 %v83
    %150 = vmatpush1.msra.mxu0 %v82
    %151 = vmatprep.subr.mxu0 %v85
    %152 = vmatpush1.msra.mxu0 %v84
    %153 = vmatprep.subr.mxu0 %v87
    %154 = vmatpush1.msra.mxu0 %v86
    %155 = vmatprep.subr.mxu0 %v89
    %156 = vmatpush1.msra.mxu0 %v88
    %157 = vmatprep.subr.mxu0 0.0
    %158 = vmatpush1.msra.mxu0 0.0
    %159 = vmatprep.subr.mxu0 0.0
    %160 = vmatpush1.msra.mxu0 0.0
    %161 = vmatprep.subr.mxu0 0.0
    %162 = vmatpush1.msra.mxu0 0.0
    %163 = vmatprep.subr.mxu0 0.0
    %164 = vmatpush1.msra.mxu0 0.0
    %165 = vmatprep.subr.mxu0 0.0
    %166 = vmatpush1.msra.mxu0 0.0
    %167 = vmatprep.subr.mxu0 0.0
    %168 = vmatpush1.msra.mxu0 0.0
    %169 = vmatprep.subr.mxu0 0.0
    %170 = vmatpush1.msra.mxu0 0.0
    %171 = vmatprep.subr.mxu0 0.0
    %172 = vmatpush1.msra.mxu0 0.0
    %173 = vmatprep.subr.mxu0 0.0
    %174 = vmatpush1.msra.mxu0 0.0
    %175 = vmatprep.subr.mxu0 0.0
    %176 = vmatpush1.msra.mxu0 0.0
    %177 = vmatprep.subr.mxu0 0.0
    %178 = vmatpush1.msra.mxu0 0.0
    %179 = vmatprep.subr.mxu0 0.0
    %180 = vmatpush1.msra.mxu0 0.0
    %181 = vmatprep.subr.mxu0 0.0
    %182 = vmatpush1.msra.mxu0 0.0
    %183 = vmatprep.subr.mxu0 0.0
    %184 = vmatpush1.msra.mxu0 0.0
    %185 = vmatprep.subr.mxu0 0.0
    %186 = vmatpush1.msra.mxu0 0.0
    %187 = vmatprep.subr.mxu0 0.0
    %188 = vmatpush1.msra.mxu0 0.0
    %189 = vmatprep.subr.mxu0 0.0
    %190 = vmatpush1.msra.mxu0 0.0
    %191 = vmatprep.subr.mxu0 0.0
    %192 = vmatpush1.msra.mxu0 0.0
    %193 = vmatprep.subr.mxu0 0.0
    %194 = vmatpush1.msra.mxu0 0.0
    %195 = vmatprep.subr.mxu0 0.0
    %196 = vmatpush1.msra.mxu0 0.0
    %197 = vmatprep.subr.mxu0 0.0
    %198 = vmatpush1.msra.mxu0 0.0
    %199 = vmatprep.subr.mxu0 0.0
    %200 = vmatpush1.msra.mxu0 0.0
    %201 = vmatprep.subr.mxu0 0.0
    %202 = vmatpush1.msra.mxu0 0.0
    %203 = vmatprep.subr.mxu0 0.0
    %204 = vmatpush1.msra.mxu0 0.0
    %205 = vmatprep.subr.mxu0 0.0
    %206 = vmatpush1.msra.mxu0 0.0
    %207 = vmatprep.subr.mxu0 0.0
    %208 = vmatpush1.msra.mxu0 0.0
    %209 = vmatprep.subr.mxu0 0.0
    %210 = vmatpush1.msra.mxu0 0.0
    %211 = vmatprep.subr.mxu0 0.0
    %212 = vmatpush1.msra.mxu0 0.0
    %213 = vmatprep.mubr.f32.mxu0 0.0
    %214 = vmatmul.mubr.f32.gmra.mrb[0].mxu0 %v145
    %v215 = vpop.f32.mrb[0].mxu0
    %v216 = vadd.f32 %v95, %v215
    %v217 = vpop.f32.mrb[0].mxu0
    %v218 = vadd.f32 %v99, %v217
    %219 = vmatprep.mubr.f32.mxu0 0.0
    %220 = vmatmul.mubr.f32.gmra.mrb[0].mxu0 %v147
    %v221 = vpop.f32.mrb[0].mxu0
    %v222 = vadd.f32 %v95, %v221
    %v223 = vpop.f32.mrb[0].mxu0
    %v224 = vadd.f32 %v99, %v223
    %225 = vdwg.mxu0
    %v226 = vld [vmem:[#allocation7] sm:$0xff]
    %v227 = vld [vmem:[#allocation7 + $0x8] sm:$0xff]
    %s228 = scalar_lea.vmem [#allocation7], 16
    %v229 = vld [vmem:[%s228] sm:$0xff]
    %v230 = vld [vmem:[%s228 + $0x8] sm:$0xff]
    %v231 = vmul.f32 %v216, %v226
    %v232 = vmul.f32 %v222, %v227
    %235 = vrot.lane.b32.xlu0 %v229, 32
    %v236 = vpop.permute.xlu0 %235
    %237 = vrot.lane.b32.xlu0 %v230, 32
    %v238 = vpop.permute.xlu0 %237
    %v241 = vmul.f32 %v216, %v236
    %v242 = vmul.f32 %v222, %v238
    %245 = vrot.lane.b32.xlu0 %v241, 96
    %v246 = vpop.permute.xlu0 %245
    %247 = vrot.lane.b32.xlu0 %v242, 96
    %v248 = vpop.permute.xlu0 %247
    %v251 = vadd.f32 %v231, %v246
    %v252 = vadd.f32 %v232, %v248
    %255 = vrot.lane.b32.xlu0 %v226, 64
    %v256 = vpop.permute.xlu0 %255
    %257 = vrot.lane.b32.xlu0 %v227, 64
    %v258 = vpop.permute.xlu0 %257
    %v261 = vmul.f32 %v216, %v256
    %v262 = vmul.f32 %v222, %v258
    %263 = vrot.lane.b32.xlu0 %v229, 96
    %v264 = vpop.permute.xlu0 %263
    %265 = vrot.lane.b32.xlu0 %v230, 96
    %v266 = vpop.permute.xlu0 %265
    %v269 = vmul.f32 %v216, %v264
    %v270 = vmul.f32 %v222, %v266
    %273 = vrot.lane.b32.xlu0 %v269, 96
    %v274 = vpop.permute.xlu0 %273
    %275 = vrot.lane.b32.xlu0 %v270, 96
    %v276 = vpop.permute.xlu0 %275
    %v279 = vadd.f32 %v261, %v274
    %v280 = vadd.f32 %v262, %v276
    %v281 = vld [vmem:[%s7] sm:$0xff]
    %v282 = vld [vmem:[%s7 + $0x8] sm:$0xff]
    %285 = vrot.lane.b32.xlu0 %v279, 64
    %v286 = vpop.permute.xlu0 %285
    %287 = vrot.lane.b32.xlu0 %v280, 64
    %v288 = vpop.permute.xlu0 %287
    %vm289 = vcmask 64512
    %v291 = vsel %vm289, %v251, 0
    %v294 = vsel %vm289, %v252, 0
    %v296 = vsel %vm289, %v286, 0
    %v298 = vsel %vm289, %v288, 0
    %300 = vmatprep.subr.mxu0 0.0
    %301 = vmatpush1.xpose.msra.mxu0 %v296
    %302 = vmatprep.subr.mxu0 0.0
    %303 = vmatpush1.xpose.msra.mxu0 %v298
    %304 = vmatprep.subr.mxu0 0.0
    %305 = vmatpush1.xpose.msra.mxu0 0.0
    %306 = vmatprep.subr.mxu0 0.0
    %307 = vmatpush1.xpose.msra.mxu0 0.0
    %308 = vmatprep.subr.mxu0 0.0
    %309 = vmatpush1.xpose.msra.mxu0 0.0
    %310 = vmatprep.subr.mxu0 0.0
    %311 = vmatpush1.xpose.msra.mxu0 0.0
    %312 = vmatprep.subr.mxu0 0.0
    %313 = vmatpush1.xpose.msra.mxu0 0.0
    %314 = vmatprep.subr.mxu0 0.0
    %315 = vmatpush1.xpose.msra.mxu0 0.0
    %316 = vmatprep.subr.mxu0 0.0
    %317 = vmatpush1.xpose.msra.mxu0 0.0
    %318 = vmatprep.subr.mxu0 0.0
    %319 = vmatpush1.xpose.msra.mxu0 0.0
    %320 = vmatprep.subr.mxu0 0.0
    %321 = vmatpush1.xpose.msra.mxu0 0.0
    %322 = vmatprep.subr.mxu0 0.0
    %323 = vmatpush1.xpose.msra.mxu0 0.0
    %324 = vmatprep.subr.mxu0 0.0
    %325 = vmatpush1.xpose.msra.mxu0 0.0
    %326 = vmatprep.subr.mxu0 0.0
    %327 = vmatpush1.xpose.msra.mxu0 0.0
    %328 = vmatprep.subr.mxu0 0.0
    %329 = vmatpush1.xpose.msra.mxu0 0.0
    %330 = vmatprep.subr.mxu0 0.0
    %331 = vmatpush1.xpose.msra.mxu0 0.0
    %332 = vmatprep.subr.mxu0 0.0
    %333 = vmatpush1.xpose.msra.mxu0 0.0
    %334 = vmatprep.subr.mxu0 0.0
    %335 = vmatpush1.xpose.msra.mxu0 0.0
    %336 = vmatprep.subr.mxu0 0.0
    %337 = vmatpush1.xpose.msra.mxu0 0.0
    %338 = vmatprep.subr.mxu0 0.0
    %339 = vmatpush1.xpose.msra.mxu0 0.0
    %340 = vmatprep.subr.mxu0 0.0
    %341 = vmatpush1.xpose.msra.mxu0 0.0
    %342 = vmatprep.subr.mxu0 0.0
    %343 = vmatpush1.xpose.msra.mxu0 0.0
    %344 = vmatprep.subr.mxu0 0.0
    %345 = vmatpush1.xpose.msra.mxu0 0.0
    %346 = vmatprep.subr.mxu0 0.0
    %347 = vmatpush1.xpose.msra.mxu0 0.0
    %348 = vmatprep.subr.mxu0 0.0
    %349 = vmatpush1.xpose.msra.mxu0 0.0
    %350 = vmatprep.subr.mxu0 0.0
    %351 = vmatpush1.xpose.msra.mxu0 0.0
    %352 = vmatprep.subr.mxu0 0.0
    %353 = vmatpush1.xpose.msra.mxu0 0.0
    %354 = vmatprep.subr.mxu0 0.0
    %355 = vmatpush1.xpose.msra.mxu0 0.0
    %356 = vmatprep.subr.mxu0 0.0
    %357 = vmatpush1.xpose.msra.mxu0 0.0
    %358 = vmatprep.subr.mxu0 0.0
    %359 = vmatpush1.xpose.msra.mxu0 0.0
    %360 = vmatprep.subr.mxu0 0.0
    %361 = vmatpush1.xpose.msra.mxu0 0.0
    %362 = vmatprep.subr.mxu0 0.0
    %363 = vmatpush1.xpose.msra.mxu0 0.0
    %364 = vmatprep.mubr.f32.mxu0 0.0
    %365 = vmatmul.mubr.f32.gmra.mrb[0].mxu0 %v291
    %v366 = vpop.f32.mrb[0].mxu0
    %v367 = vadd.f32 %v281, %v366
    %v368 = vpop.f32.mrb[0].mxu0
    %369 = vmatprep.mubr.f32.mxu0 0.0
    %370 = vmatmul.mubr.f32.gmra.mrb[0].mxu0 %v294
    %v371 = vpop.f32.mrb[0].mxu0
    %v372 = vadd.f32 %v282, %v371
    %v373 = vpop.f32.mrb[0].mxu0
    %374 = vdwg.mxu0
    %vm375 = vcmask 130048
    %v376 = vsel %vm375, %v367, -inf
    %377 = vmax.xlane.f32.xlu0 %v376
    %v378 = vpop.xlane.xlu0 %377
    %v379 = vsel %vm375, %v372, -inf
    %380 = vmax.xlane.f32.xlu0 %v379
    %v381 = vpop.xlane.xlu0 %380
    %v382 = vsub.f32 %v367, %v378
    %v383 = vsub.f32 %v372, %v381
    %v384 = vmul.f32 %v382, 1.442695
    %v385 = vpow.pop %v384
    %v386 = vmul.f32 %v383, 1.442695
    %v387 = vpow.pop %v386
    %v388 = vsel %vm375, %v385, 0.0
    %389 = vadd.xlane.f32.xlu0 %v388
    %v390 = vpop.xlane.xlu0 %389
    %v391 = vsel %vm375, %v387, 0.0
    %392 = vadd.xlane.f32.xlu0 %v391
    %v393 = vpop.xlane.xlu0 %392
    %v394 = vrcp.pop %v390
    %v395 = vrcp.pop %v393
    %v396 = vmul.f32 %v385, %v394
    %v397 = vmul.f32 %v387, %v395
    %v399 = vsel %vm375, %v396, 0
    %v402 = vsel %vm375, %v397, 0
    %404 = vmatprep.subr.mxu0 0.0
    %405 = vmatpush1.msra.mxu0 %v218
    %406 = vmatprep.subr.mxu0 0.0
    %407 = vmatpush1.msra.mxu0 %v224
    %408 = vmatprep.subr.mxu0 0.0
    %409 = vmatpush1.msra.mxu0 0.0
    %410 = vmatprep.subr.mxu0 0.0
    %411 = vmatpush1.msra.mxu0 0.0
    %412 = vmatprep.subr.mxu0 0.0
    %413 = vmatpush1.msra.mxu0 0.0
    %414 = vmatprep.subr.mxu0 0.0
    %415 = vmatpush1.msra.mxu0 0.0
    %416 = vmatprep.subr.mxu0 0.0
    %417 = vmatpush1.msra.mxu0 0.0
    %418 = vmatprep.subr.mxu0 0.0
    %419 = vmatpush1.msra.mxu0 0.0
    %420 = vmatprep.subr.mxu0 0.0
    %421 = vmatpush1.msra.mxu0 0.0
    %422 = vmatprep.subr.mxu0 0.0
    %423 = vmatpush1.msra.mxu0 0.0
    %424 = vmatprep.subr.mxu0 0.0
    %425 = vmatpush1.msra.mxu0 0.0
    %426 = vmatprep.subr.mxu0 0.0
    %427 = vmatpush1.msra.mxu0 0.0
    %428 = vmatprep.subr.mxu0 0.0
    %429 = vmatpush1.msra.mxu0 0.0
    %430 = vmatprep.subr.mxu0 0.0
    %431 = vmatpush1.msra.mxu0 0.0
    %432 = vmatprep.subr.mxu0 0.0
    %433 = vmatpush1.msra.mxu0 0.0
    %434 = vmatprep.subr.mxu0 0.0
    %435 = vmatpush1.msra.mxu0 0.0
    %436 = vmatprep.subr.mxu0 0.0
    %437 = vmatpush1.msra.mxu0 0.0
    %438 = vmatprep.subr.mxu0 0.0
    %439 = vmatpush1.msra.mxu0 0.0
    %440 = vmatprep.subr.mxu0 0.0
    %441 = vmatpush1.msra.mxu0 0.0
    %442 = vmatprep.subr.mxu0 0.0
    %443 = vmatpush1.msra.mxu0 0.0
    %444 = vmatprep.subr.mxu0 0.0
    %445 = vmatpush1.msra.mxu0 0.0
    %446 = vmatprep.subr.mxu0 0.0
    %447 = vmatpush1.msra.mxu0 0.0
    %448 = vmatprep.subr.mxu0 0.0
    %449 = vmatpush1.msra.mxu0 0.0
    %450 = vmatprep.subr.mxu0 0.0
    %451 = vmatpush1.msra.mxu0 0.0
    %452 = vmatprep.subr.mxu0 0.0
    %453 = vmatpush1.msra.mxu0 0.0
    %454 = vmatprep.subr.mxu0 0.0
    %455 = vmatpush1.msra.mxu0 0.0
    %456 = vmatprep.subr.mxu0 0.0
    %457 = vmatpush1.msra.mxu0 0.0
    %458 = vmatprep.subr.mxu0 0.0
    %459 = vmatpush1.msra.mxu0 0.0
    %460 = vmatprep.subr.mxu0 0.0
    %461 = vmatpush1.msra.mxu0 0.0
    %462 = vmatprep.subr.mxu0 0.0
    %463 = vmatpush1.msra.mxu0 0.0
    %464 = vmatprep.subr.mxu0 0.0
    %465 = vmatpush1.msra.mxu0 0.0
    %466 = vmatprep.subr.mxu0 0.0
    %467 = vmatpush1.msra.mxu0 0.0
    %468 = vmatprep.mubr.f32.mxu0 0.0
    %469 = vmatmul.mubr.f32.gmra.mrb[0].mxu0 %v399
    %v470 = vpop.f32.mrb[0].mxu0
    %v471 = vadd.f32 0.0, %v470
    %v472 = vpop.f32.mrb[0].mxu0
    %473 = vmatprep.mubr.f32.mxu0 0.0
    %474 = vmatmul.mubr.f32.gmra.mrb[0].mxu0 %v402
    %v475 = vpop.f32.mrb[0].mxu0
    %v476 = vadd.f32 0.0, %v475
    %v477 = vpop.f32.mrb[0].mxu0
    %478 = vdwg.mxu0
    %479 = vrot.lane.b32.xlu0 %v251, 120
    %v480 = vpop.permute.xlu0 %479
    %481 = vrot.lane.b32.xlu0 %v252, 120
    %v482 = vpop.permute.xlu0 %481
    %483 = vrot.lane.b32.xlu0 %v279, 56
    %v484 = vpop.permute.xlu0 %483
    %485 = vrot.lane.b32.xlu0 %v280, 56
    %v486 = vpop.permute.xlu0 %485
    %v487 = vsel %vm289, %v480, 0
    %v489 = vsel %vm289, %v482, 0
    %v491 = vsel %vm289, %v484, 0
    %v493 = vsel %vm289, %v486, 0
    %495 = vmatprep.subr.mxu0 0.0
    %496 = vmatpush1.xpose.msra.mxu0 %v491
    %497 = vmatprep.subr.mxu0 0.0
    %498 = vmatpush1.xpose.msra.mxu0 %v493
    %499 = vmatprep.subr.mxu0 0.0
    %500 = vmatpush1.xpose.msra.mxu0 0.0
    %501 = vmatprep.subr.mxu0 0.0
    %502 = vmatpush1.xpose.msra.mxu0 0.0
    %503 = vmatprep.subr.mxu0 0.0
    %504 = vmatpush1.xpose.msra.mxu0 0.0
    %505 = vmatprep.subr.mxu0 0.0
    %506 = vmatpush1.xpose.msra.mxu0 0.0
    %507 = vmatprep.subr.mxu0 0.0
    %508 = vmatpush1.xpose.msra.mxu0 0.0
    %509 = vmatprep.subr.mxu0 0.0
    %510 = vmatpush1.xpose.msra.mxu0 0.0
    %511 = vmatprep.subr.mxu0 0.0
    %512 = vmatpush1.xpose.msra.mxu0 0.0
    %513 = vmatprep.subr.mxu0 0.0
    %514 = vmatpush1.xpose.msra.mxu0 0.0
    %515 = vmatprep.subr.mxu0 0.0
    %516 = vmatpush1.xpose.msra.mxu0 0.0
    %517 = vmatprep.subr.mxu0 0.0
    %518 = vmatpush1.xpose.msra.mxu0 0.0
    %519 = vmatprep.subr.mxu0 0.0
    %520 = vmatpush1.xpose.msra.mxu0 0.0
    %521 = vmatprep.subr.mxu0 0.0
    %522 = vmatpush1.xpose.msra.mxu0 0.0
    %523 = vmatprep.subr.mxu0 0.0
    %524 = vmatpush1.xpose.msra.mxu0 0.0
    %525 = vmatprep.subr.mxu0 0.0
    %526 = vmatpush1.xpose.msra.mxu0 0.0
    %527 = vmatprep.subr.mxu0 0.0
    %528 = vmatpush1.xpose.msra.mxu0 0.0
    %529 = vmatprep.subr.mxu0 0.0
    %530 = vmatpush1.xpose.msra.mxu0 0.0
    %531 = vmatprep.subr.mxu0 0.0
    %532 = vmatpush1.xpose.msra.mxu0 0.0
    %533 = vmatprep.subr.mxu0 0.0
    %534 = vmatpush1.xpose.msra.mxu0 0.0
    %535 = vmatprep.subr.mxu0 0.0
    %536 = vmatpush1.xpose.msra.mxu0 0.0
    %537 = vmatprep.subr.mxu0 0.0
    %538 = vmatpush1.xpose.msra.mxu0 0.0
    %539 = vmatprep.subr.mxu0 0.0
    %540 = vmatpush1.xpose.msra.mxu0 0.0
    %541 = vmatprep.subr.mxu0 0.0
    %542 = vmatpush1.xpose.msra.mxu0 0.0
    %543 = vmatprep.subr.mxu0 0.0
    %544 = vmatpush1.xpose.msra.mxu0 0.0
    %545 = vmatprep.subr.mxu0 0.0
    %546 = vmatpush1.xpose.msra.mxu0 0.0
    %547 = vmatprep.subr.mxu0 0.0
    %548 = vmatpush1.xpose.msra.mxu0 0.0
    %549 = vmatprep.subr.mxu0 0.0
    %550 = vmatpush1.xpose.msra.mxu0 0.0
    %551 = vmatprep.subr.mxu0 0.0
    %552 = vmatpush1.xpose.msra.mxu0 0.0
    %553 = vmatprep.subr.mxu0 0.0
    %554 = vmatpush1.xpose.msra.mxu0 0.0
    %555 = vmatprep.subr.mxu0 0.0
    %556 = vmatpush1.xpose.msra.mxu0 0.0
    %557 = vmatprep.subr.mxu0 0.0
    %558 = vmatpush1.xpose.msra.mxu0 0.0
    %559 = vmatprep.mubr.f32.mxu0 0.0
    %560 = vmatmul.mubr.f32.gmra.mrb[0].mxu0 %v487
    %v561 = vpop.f32.mrb[0].mxu0
    %v562 = vadd.f32 %v281, %v561
    %v563 = vpop.f32.mrb[0].mxu0
    %564 = vmatprep.mubr.f32.mxu0 0.0
    %565 = vmatmul.mubr.f32.gmra.mrb[0].mxu0 %v489
    %v566 = vpop.f32.mrb[0].mxu0
    %v567 = vadd.f32 %v282, %v566
    %v568 = vpop.f32.mrb[0].mxu0
    %569 = vdwg.mxu0
    %v570 = vsel %vm375, %v562, -inf
    %571 = vmax.xlane.f32.xlu0 %v570
    %v572 = vpop.xlane.xlu0 %571
    %v573 = vsel %vm375, %v567, -inf
    %574 = vmax.xlane.f32.xlu0 %v573
    %v575 = vpop.xlane.xlu0 %574
    %v576 = vsub.f32 %v562, %v572
    %v577 = vsub.f32 %v567, %v575
    %v578 = vmul.f32 %v576, 1.442695
    %v579 = vpow.pop %v578
    %v580 = vmul.f32 %v577, 1.442695
    %v581 = vpow.pop %v580
    %v582 = vsel %vm375, %v579, 0.0
    %583 = vadd.xlane.f32.xlu0 %v582
    %v584 = vpop.xlane.xlu0 %583
    %v585 = vsel %vm375, %v581, 0.0
    %586 = vadd.xlane.f32.xlu0 %v585
    %v587 = vpop.xlane.xlu0 %586
    %v588 = vrcp.pop %v584
    %v589 = vrcp.pop %v587
    %v590 = vmul.f32 %v579, %v588
    %v591 = vmul.f32 %v581, %v589
    %594 = vrot.lane.b32.xlu0 %v218, 120
    %v595 = vpop.permute.xlu0 %594
    %596 = vrot.lane.b32.xlu0 %v224, 120
    %v597 = vpop.permute.xlu0 %596
    %v601 = vsel %vm375, %v590, 0
    %v604 = vsel %vm375, %v591, 0
    %606 = vmatprep.subr.mxu0 0.0
    %607 = vmatpush1.msra.mxu0 %v595
    %608 = vmatprep.subr.mxu0 0.0
    %609 = vmatpush1.msra.mxu0 %v597
    %610 = vmatprep.subr.mxu0 0.0
    %611 = vmatpush1.msra.mxu0 0.0
    %612 = vmatprep.subr.mxu0 0.0
    %613 = vmatpush1.msra.mxu0 0.0
    %614 = vmatprep.subr.mxu0 0.0
    %615 = vmatpush1.msra.mxu0 0.0
    %616 = vmatprep.subr.mxu0 0.0
    %617 = vmatpush1.msra.mxu0 0.0
    %618 = vmatprep.subr.mxu0 0.0
    %619 = vmatpush1.msra.mxu0 0.0
    %620 = vmatprep.subr.mxu0 0.0
    %621 = vmatpush1.msra.mxu0 0.0
    %622 = vmatprep.subr.mxu0 0.0
    %623 = vmatpush1.msra.mxu0 0.0
    %624 = vmatprep.subr.mxu0 0.0
    %625 = vmatpush1.msra.mxu0 0.0
    %626 = vmatprep.subr.mxu0 0.0
    %627 = vmatpush1.msra.mxu0 0.0
    %628 = vmatprep.subr.mxu0 0.0
    %629 = vmatpush1.msra.mxu0 0.0
    %630 = vmatprep.subr.mxu0 0.0
    %631 = vmatpush1.msra.mxu0 0.0
    %632 = vmatprep.subr.mxu0 0.0
    %633 = vmatpush1.msra.mxu0 0.0
    %634 = vmatprep.subr.mxu0 0.0
    %635 = vmatpush1.msra.mxu0 0.0
    %636 = vmatprep.subr.mxu0 0.0
    %637 = vmatpush1.msra.mxu0 0.0
    %638 = vmatprep.subr.mxu0 0.0
    %639 = vmatpush1.msra.mxu0 0.0
    %640 = vmatprep.subr.mxu0 0.0
    %641 = vmatpush1.msra.mxu0 0.0
    %642 = vmatprep.subr.mxu0 0.0
    %643 = vmatpush1.msra.mxu0 0.0
    %644 = vmatprep.subr.mxu0 0.0
    %645 = vmatpush1.msra.mxu0 0.0
    %646 = vmatprep.subr.mxu0 0.0
    %647 = vmatpush1.msra.mxu0 0.0
    %648 = vmatprep.subr.mxu0 0.0
    %649 = vmatpush1.msra.mxu0 0.0
    %650 = vmatprep.subr.mxu0 0.0
    %651 = vmatpush1.msra.mxu0 0.0
    %652 = vmatprep.subr.mxu0 0.0
    %653 = vmatpush1.msra.mxu0 0.0
    %654 = vmatprep.subr.mxu0 0.0
    %655 = vmatpush1.msra.mxu0 0.0
    %656 = vmatprep.subr.mxu0 0.0
    %657 = vmatpush1.msra.mxu0 0.0
    %658 = vmatprep.subr.mxu0 0.0
    %659 = vmatpush1.msra.mxu0 0.0
    %660 = vmatprep.subr.mxu0 0.0
    %661 = vmatpush1.msra.mxu0 0.0
    %662 = vmatprep.subr.mxu0 0.0
    %663 = vmatpush1.msra.mxu0 0.0
    %664 = vmatprep.subr.mxu0 0.0
    %665 = vmatpush1.msra.mxu0 0.0
    %666 = vmatprep.subr.mxu0 0.0
    %667 = vmatpush1.msra.mxu0 0.0
    %668 = vmatprep.subr.mxu0 0.0
    %669 = vmatpush1.msra.mxu0 0.0
    %670 = vmatprep.mubr.f32.mxu0 0.0
    %671 = vmatmul.mubr.f32.gmra.mrb[0].mxu0 %v601
    %v672 = vpop.f32.mrb[0].mxu0
    %v673 = vadd.f32 0.0, %v672
    %v674 = vpop.f32.mrb[0].mxu0
    %675 = vmatprep.mubr.f32.mxu0 0.0
    %676 = vmatmul.mubr.f32.gmra.mrb[0].mxu0 %v604
    %v677 = vpop.f32.mrb[0].mxu0
    %v678 = vadd.f32 0.0, %v677
    %v679 = vpop.f32.mrb[0].mxu0
    %680 = vdwg.mxu0
    %681 = vrot.lane.b32.xlu0 %v251, 112
    %v682 = vpop.permute.xlu0 %681
    %683 = vrot.lane.b32.xlu0 %v252, 112
    %v684 = vpop.permute.xlu0 %683
    %685 = vrot.lane.b32.xlu0 %v279, 48
    %v686 = vpop.permute.xlu0 %685
    %687 = vrot.lane.b32.xlu0 %v280, 48
    %v688 = vpop.permute.xlu0 %687
    %v689 = vsel %vm289, %v682, 0
    %v691 = vsel %vm289, %v684, 0
    %v693 = vsel %vm289, %v686, 0
    %v695 = vsel %vm289, %v688, 0
    %697 = vmatprep.subr.mxu0 0.0
    %698 = vmatpush1.xpose.msra.mxu0 %v693
    %699 = vmatprep.subr.mxu0 0.0
    %700 = vmatpush1.xpose.msra.mxu0 %v695
    %701 = vmatprep.subr.mxu0 0.0
    %702 = vmatpush1.xpose.msra.mxu0 0.0
    %703 = vmatprep.subr.mxu0 0.0
    %704 = vmatpush1.xpose.msra.mxu0 0.0
    %705 = vmatprep.subr.mxu0 0.0
    %706 = vmatpush1.xpose.msra.mxu0 0.0
    %707 = vmatprep.subr.mxu0 0.0
    %708 = vmatpush1.xpose.msra.mxu0 0.0
    %709 = vmatprep.subr.mxu0 0.0
    %710 = vmatpush1.xpose.msra.mxu0 0.0
    %711 = vmatprep.subr.mxu0 0.0
    %712 = vmatpush1.xpose.msra.mxu0 0.0
    %713 = vmatprep.subr.mxu0 0.0
    %714 = vmatpush1.xpose.msra.mxu0 0.0
    %715 = vmatprep.subr.mxu0 0.0
    %716 = vmatpush1.xpose.msra.mxu0 0.0
    %717 = vmatprep.subr.mxu0 0.0
    %718 = vmatpush1.xpose.msra.mxu0 0.0
    %719 = vmatprep.subr.mxu0 0.0
    %720 = vmatpush1.xpose.msra.mxu0 0.0
    %721 = vmatprep.subr.mxu0 0.0
    %722 = vmatpush1.xpose.msra.mxu0 0.0
    %723 = vmatprep.subr.mxu0 0.0
    %724 = vmatpush1.xpose.msra.mxu0 0.0
    %725 = vmatprep.subr.mxu0 0.0
    %726 = vmatpush1.xpose.msra.mxu0 0.0
    %727 = vmatprep.subr.mxu0 0.0
    %728 = vmatpush1.xpose.msra.mxu0 0.0
    %729 = vmatprep.subr.mxu0 0.0
    %730 = vmatpush1.xpose.msra.mxu0 0.0
    %731 = vmatprep.subr.mxu0 0.0
    %732 = vmatpush1.xpose.msra.mxu0 0.0
    %733 = vmatprep.subr.mxu0 0.0
    %734 = vmatpush1.xpose.msra.mxu0 0.0
    %735 = vmatprep.subr.mxu0 0.0
    %736 = vmatpush1.xpose.msra.mxu0 0.0
    %737 = vmatprep.subr.mxu0 0.0
    %738 = vmatpush1.xpose.msra.mxu0 0.0
    %739 = vmatprep.subr.mxu0 0.0
    %740 = vmatpush1.xpose.msra.mxu0 0.0
    %741 = vmatprep.subr.mxu0 0.0
    %742 = vmatpush1.xpose.msra.mxu0 0.0
    %743 = vmatprep.subr.mxu0 0.0
    %744 = vmatpush1.xpose.msra.mxu0 0.0
    %745 = vmatprep.subr.mxu0 0.0
    %746 = vmatpush1.xpose.msra.mxu0 0.0
    %747 = vmatprep.subr.mxu0 0.0
    %748 = vmatpush1.xpose.msra.mxu0 0.0
    %749 = vmatprep.subr.mxu0 0.0
    %750 = vmatpush1.xpose.msra.mxu0 0.0
    %751 = vmatprep.subr.mxu0 0.0
    %752 = vmatpush1.xpose.msra.mxu0 0.0
    %753 = vmatprep.subr.mxu0 0.0
    %754 = vmatpush1.xpose.msra.mxu0 0.0
    %755 = vmatprep.subr.mxu0 0.0
    %756 = vmatpush1.xpose.msra.mxu0 0.0
    %757 = vmatprep.subr.mxu0 0.0
    %758 = vmatpush1.xpose.msra.mxu0 0.0
    %759 = vmatprep.subr.mxu0 0.0
    %760 = vmatpush1.xpose.msra.mxu0 0.0
    %761 = vmatprep.mubr.f32.mxu0 0.0
    %762 = vmatmul.mubr.f32.gmra.mrb[0].mxu0 %v689
    %v763 = vpop.f32.mrb[0].mxu0
    %v764 = vadd.f32 %v281, %v763
    %v765 = vpop.f32.mrb[0].mxu0
    %766 = vmatprep.mubr.f32.mxu0 0.0
    %767 = vmatmul.mubr.f32.gmra.mrb[0].mxu0 %v691
    %v768 = vpop.f32.mrb[0].mxu0
    %v769 = vadd.f32 %v282, %v768
    %v770 = vpop.f32.mrb[0].mxu0
    %771 = vdwg.mxu0
    %v772 = vsel %vm375, %v764, -inf
    %773 = vmax.xlane.f32.xlu0 %v772
    %v774 = vpop.xlane.xlu0 %773
    %v775 = vsel %vm375, %v769, -inf
    %776 = vmax.xlane.f32.xlu0 %v775
    %v777 = vpop.xlane.xlu0 %776
    %v778 = vsub.f32 %v764, %v774
    %v779 = vsub.f32 %v769, %v777
    %v780 = vmul.f32 %v778, 1.442695
    %v781 = vpow.pop %v780
    %v782 = vmul.f32 %v779, 1.442695
    %v783 = vpow.pop %v782
    %v784 = vsel %vm375, %v781, 0.0
    %785 = vadd.xlane.f32.xlu0 %v784
    %v786 = vpop.xlane.xlu0 %785
    %v787 = vsel %vm375, %v783, 0.0
    %788 = vadd.xlane.f32.xlu0 %v787
    %v789 = vpop.xlane.xlu0 %788
    %v790 = vrcp.pop %v786
    %v791 = vrcp.pop %v789
    %v792 = vmul.f32 %v781, %v790
    %v793 = vmul.f32 %v783, %v791
    %794 = vrot.lane.b32.xlu0 %v218, 112
    %v795 = vpop.permute.xlu0 %794
    %796 = vrot.lane.b32.xlu0 %v224, 112
    %v797 = vpop.permute.xlu0 %796
    %v801 = vsel %vm375, %v792, 0
    %v804 = vsel %vm375, %v793, 0
    %806 = vmatprep.subr.mxu0 0.0
    %807 = vmatpush1.msra.mxu0 %v795
    %808 = vmatprep.subr.mxu0 0.0
    %809 = vmatpush1.msra.mxu0 %v797
    %810 = vmatprep.subr.mxu0 0.0
    %811 = vmatpush1.msra.mxu0 0.0
    %812 = vmatprep.subr.mxu0 0.0
    %813 = vmatpush1.msra.mxu0 0.0
    %814 = vmatprep.subr.mxu0 0.0
    %815 = vmatpush1.msra.mxu0 0.0
    %816 = vmatprep.subr.mxu0 0.0
    %817 = vmatpush1.msra.mxu0 0.0
    %818 = vmatprep.subr.mxu0 0.0
    %819 = vmatpush1.msra.mxu0 0.0
    %820 = vmatprep.subr.mxu0 0.0
    %821 = vmatpush1.msra.mxu0 0.0
    %822 = vmatprep.subr.mxu0 0.0
    %823 = vmatpush1.msra.mxu0 0.0
    %824 = vmatprep.subr.mxu0 0.0
    %825 = vmatpush1.msra.mxu0 0.0
    %826 = vmatprep.subr.mxu0 0.0
    %827 = vmatpush1.msra.mxu0 0.0
    %828 = vmatprep.subr.mxu0 0.0
    %829 = vmatpush1.msra.mxu0 0.0
    %830 = vmatprep.subr.mxu0 0.0
    %831 = vmatpush1.msra.mxu0 0.0
    %832 = vmatprep.subr.mxu0 0.0
    %833 = vmatpush1.msra.mxu0 0.0
    %834 = vmatprep.subr.mxu0 0.0
    %835 = vmatpush1.msra.mxu0 0.0
    %836 = vmatprep.subr.mxu0 0.0
    %837 = vmatpush1.msra.mxu0 0.0
    %838 = vmatprep.subr.mxu0 0.0
    %839 = vmatpush1.msra.mxu0 0.0
    %840 = vmatprep.subr.mxu0 0.0
    %841 = vmatpush1.msra.mxu0 0.0
    %842 = vmatprep.subr.mxu0 0.0
    %843 = vmatpush1.msra.mxu0 0.0
    %844 = vmatprep.subr.mxu0 0.0
    %845 = vmatpush1.msra.mxu0 0.0
    %846 = vmatprep.subr.mxu0 0.0
    %847 = vmatpush1.msra.mxu0 0.0
    %848 = vmatprep.subr.mxu0 0.0
    %849 = vmatpush1.msra.mxu0 0.0
    %850 = vmatprep.subr.mxu0 0.0
    %851 = vmatpush1.msra.mxu0 0.0
    %852 = vmatprep.subr.mxu0 0.0
    %853 = vmatpush1.msra.mxu0 0.0
    %854 = vmatprep.subr.mxu0 0.0
    %855 = vmatpush1.msra.mxu0 0.0
    %856 = vmatprep.subr.mxu0 0.0
    %857 = vmatpush1.msra.mxu0 0.0
    %858 = vmatprep.subr.mxu0 0.0
    %859 = vmatpush1.msra.mxu0 0.0
    %860 = vmatprep.subr.mxu0 0.0
    %861 = vmatpush1.msra.mxu0 0.0
    %862 = vmatprep.subr.mxu0 0.0
    %863 = vmatpush1.msra.mxu0 0.0
    %864 = vmatprep.subr.mxu0 0.0
    %865 = vmatpush1.msra.mxu0 0.0
    %866 = vmatprep.subr.mxu0 0.0
    %867 = vmatpush1.msra.mxu0 0.0
    %868 = vmatprep.subr.mxu0 0.0
    %869 = vmatpush1.msra.mxu0 0.0
    %870 = vmatprep.mubr.f32.mxu0 0.0
    %871 = vmatmul.mubr.f32.gmra.mrb[0].mxu0 %v801
    %v872 = vpop.f32.mrb[0].mxu0
    %v873 = vadd.f32 0.0, %v872
    %v874 = vpop.f32.mrb[0].mxu0
    %875 = vmatprep.mubr.f32.mxu0 0.0
    %876 = vmatmul.mubr.f32.gmra.mrb[0].mxu0 %v804
    %v877 = vpop.f32.mrb[0].mxu0
    %v878 = vadd.f32 0.0, %v877
    %v879 = vpop.f32.mrb[0].mxu0
    %880 = vdwg.mxu0
    %881 = vrot.lane.b32.xlu0 %v251, 104
    %v882 = vpop.permute.xlu0 %881
    %883 = vrot.lane.b32.xlu0 %v252, 104
    %v884 = vpop.permute.xlu0 %883
    %885 = vrot.lane.b32.xlu0 %v279, 40
    %v886 = vpop.permute.xlu0 %885
    %887 = vrot.lane.b32.xlu0 %v280, 40
    %v888 = vpop.permute.xlu0 %887
    %v889 = vsel %vm289, %v882, 0
    %v891 = vsel %vm289, %v884, 0
    %v893 = vsel %vm289, %v886, 0
    %v895 = vsel %vm289, %v888, 0
    %897 = vmatprep.subr.mxu0 0.0
    %898 = vmatpush1.xpose.msra.mxu0 %v893
    %899 = vmatprep.subr.mxu0 0.0
    %900 = vmatpush1.xpose.msra.mxu0 %v895
    %901 = vmatprep.subr.mxu0 0.0
    %902 = vmatpush1.xpose.msra.mxu0 0.0
    %903 = vmatprep.subr.mxu0 0.0
    %904 = vmatpush1.xpose.msra.mxu0 0.0
    %905 = vmatprep.subr.mxu0 0.0
    %906 = vmatpush1.xpose.msra.mxu0 0.0
    %907 = vmatprep.subr.mxu0 0.0
    %908 = vmatpush1.xpose.msra.mxu0 0.0
    %909 = vmatprep.subr.mxu0 0.0
    %910 = vmatpush1.xpose.msra.mxu0 0.0
    %911 = vmatprep.subr.mxu0 0.0
    %912 = vmatpush1.xpose.msra.mxu0 0.0
    %913 = vmatprep.subr.mxu0 0.0
    %914 = vmatpush1.xpose.msra.mxu0 0.0
    %915 = vmatprep.subr.mxu0 0.0
    %916 = vmatpush1.xpose.msra.mxu0 0.0
    %917 = vmatprep.subr.mxu0 0.0
    %918 = vmatpush1.xpose.msra.mxu0 0.0
    %919 = vmatprep.subr.mxu0 0.0
    %920 = vmatpush1.xpose.msra.mxu0 0.0
    %921 = vmatprep.subr.mxu0 0.0
    %922 = vmatpush1.xpose.msra.mxu0 0.0
    %923 = vmatprep.subr.mxu0 0.0
    %924 = vmatpush1.xpose.msra.mxu0 0.0
    %925 = vmatprep.subr.mxu0 0.0
    %926 = vmatpush1.xpose.msra.mxu0 0.0
    %927 = vmatprep.subr.mxu0 0.0
    %928 = vmatpush1.xpose.msra.mxu0 0.0
    %929 = vmatprep.subr.mxu0 0.0
    %930 = vmatpush1.xpose.msra.mxu0 0.0
    %931 = vmatprep.subr.mxu0 0.0
    %932 = vmatpush1.xpose.msra.mxu0 0.0
    %933 = vmatprep.subr.mxu0 0.0
    %934 = vmatpush1.xpose.msra.mxu0 0.0
    %935 = vmatprep.subr.mxu0 0.0
    %936 = vmatpush1.xpose.msra.mxu0 0.0
    %937 = vmatprep.subr.mxu0 0.0
    %938 = vmatpush1.xpose.msra.mxu0 0.0
    %939 = vmatprep.subr.mxu0 0.0
    %940 = vmatpush1.xpose.msra.mxu0 0.0
    %941 = vmatprep.subr.mxu0 0.0
    %942 = vmatpush1.xpose.msra.mxu0 0.0
    %943 = vmatprep.subr.mxu0 0.0
    %944 = vmatpush1.xpose.msra.mxu0 0.0
    %945 = vmatprep.subr.mxu0 0.0
    %946 = vmatpush1.xpose.msra.mxu0 0.0
    %947 = vmatprep.subr.mxu0 0.0
    %948 = vmatpush1.xpose.msra.mxu0 0.0
    %949 = vmatprep.subr.mxu0 0.0
    %950 = vmatpush1.xpose.msra.mxu0 0.0
    %951 = vmatprep.subr.mxu0 0.0
    %952 = vmatpush1.xpose.msra.mxu0 0.0
    %953 = vmatprep.subr.mxu0 0.0
    %954 = vmatpush1.xpose.msra.mxu0 0.0
    %955 = vmatprep.subr.mxu0 0.0
    %956 = vmatpush1.xpose.msra.mxu0 0.0
    %957 = vmatprep.subr.mxu0 0.0
    %958 = vmatpush1.xpose.msra.mxu0 0.0
    %959 = vmatprep.subr.mxu0 0.0
    %960 = vmatpush1.xpose.msra.mxu0 0.0
    %961 = vmatprep.mubr.f32.mxu0 0.0
    %962 = vmatmul.mubr.f32.gmra.mrb[0].mxu0 %v889
    %v963 = vpop.f32.mrb[0].mxu0
    %v964 = vadd.f32 %v281, %v963
    %v965 = vpop.f32.mrb[0].mxu0
    %966 = vmatprep.mubr.f32.mxu0 0.0
    %967 = vmatmul.mubr.f32.gmra.mrb[0].mxu0 %v891
    %v968 = vpop.f32.mrb[0].mxu0
    %v969 = vadd.f32 %v282, %v968
    %v970 = vpop.f32.mrb[0].mxu0
    %971 = vdwg.mxu0
    %v972 = vsel %vm375, %v964, -inf
    %973 = vmax.xlane.f32.xlu0 %v972
    %v974 = vpop.xlane.xlu0 %973
    %v975 = vsel %vm375, %v969, -inf
    %976 = vmax.xlane.f32.xlu0 %v975
    %v977 = vpop.xlane.xlu0 %976
    %v978 = vsub.f32 %v964, %v974
    %v979 = vsub.f32 %v969, %v977
    %v980 = vmul.f32 %v978, 1.442695
    %v981 = vpow.pop %v980
    %v982 = vmul.f32 %v979, 1.442695
    %v983 = vpow.pop %v982
    %v984 = vsel %vm375, %v981, 0.0
    %985 = vadd.xlane.f32.xlu0 %v984
    %v986 = vpop.xlane.xlu0 %985
    %v987 = vsel %vm375, %v983, 0.0
    %988 = vadd.xlane.f32.xlu0 %v987
    %v989 = vpop.xlane.xlu0 %988
    %v990 = vrcp.pop %v986
    %v991 = vrcp.pop %v989
    %v992 = vmul.f32 %v981, %v990
    %v993 = vmul.f32 %v983, %v991
    %994 = vrot.lane.b32.xlu0 %v218, 104
    %v995 = vpop.permute.xlu0 %994
    %996 = vrot.lane.b32.xlu0 %v224, 104
    %v997 = vpop.permute.xlu0 %996
    %v1001 = vsel %vm375, %v992, 0
    %v1004 = vsel %vm375, %v993, 0
    %1006 = vmatprep.subr.mxu0 0.0
    %1007 = vmatpush1.msra.mxu0 %v995
    %1008 = vmatprep.subr.mxu0 0.0
    %1009 = vmatpush1.msra.mxu0 %v997
    %1010 = vmatprep.subr.mxu0 0.0
    %1011 = vmatpush1.msra.mxu0 0.0
    %1012 = vmatprep.subr.mxu0 0.0
    %1013 = vmatpush1.msra.mxu0 0.0
    %1014 = vmatprep.subr.mxu0 0.0
    %1015 = vmatpush1.msra.mxu0 0.0
    %1016 = vmatprep.subr.mxu0 0.0
    %1017 = vmatpush1.msra.mxu0 0.0
    %1018 = vmatprep.subr.mxu0 0.0
    %1019 = vmatpush1.msra.mxu0 0.0
    %1020 = vmatprep.subr.mxu0 0.0
    %1021 = vmatpush1.msra.mxu0 0.0
    %1022 = vmatprep.subr.mxu0 0.0
    %1023 = vmatpush1.msra.mxu0 0.0
    %1024 = vmatprep.subr.mxu0 0.0
    %1025 = vmatpush1.msra.mxu0 0.0
    %1026 = vmatprep.subr.mxu0 0.0
    %1027 = vmatpush1.msra.mxu0 0.0
    %1028 = vmatprep.subr.mxu0 0.0
    %1029 = vmatpush1.msra.mxu0 0.0
    %1030 = vmatprep.subr.mxu0 0.0
    %1031 = vmatpush1.msra.mxu0 0.0
    %1032 = vmatprep.subr.mxu0 0.0
    %1033 = vmatpush1.msra.mxu0 0.0
    %1034 = vmatprep.subr.mxu0 0.0
    %1035 = vmatpush1.msra.mxu0 0.0
    %1036 = vmatprep.subr.mxu0 0.0
    %1037 = vmatpush1.msra.mxu0 0.0
    %1038 = vmatprep.subr.mxu0 0.0
    %1039 = vmatpush1.msra.mxu0 0.0
    %1040 = vmatprep.subr.mxu0 0.0
    %1041 = vmatpush1.msra.mxu0 0.0
    %1042 = vmatprep.subr.mxu0 0.0
    %1043 = vmatpush1.msra.mxu0 0.0
    %1044 = vmatprep.subr.mxu0 0.0
    %1045 = vmatpush1.msra.mxu0 0.0
    %1046 = vmatprep.subr.mxu0 0.0
    %1047 = vmatpush1.msra.mxu0 0.0
    %1048 = vmatprep.subr.mxu0 0.0
    %1049 = vmatpush1.msra.mxu0 0.0
    %1050 = vmatprep.subr.mxu0 0.0
    %1051 = vmatpush1.msra.mxu0 0.0
    %1052 = vmatprep.subr.mxu0 0.0
    %1053 = vmatpush1.msra.mxu0 0.0
    %1054 = vmatprep.subr.mxu0 0.0
    %1055 = vmatpush1.msra.mxu0 0.0
    %1056 = vmatprep.subr.mxu0 0.0
    %1057 = vmatpush1.msra.mxu0 0.0
    %1058 = vmatprep.subr.mxu0 0.0
    %1059 = vmatpush1.msra.mxu0 0.0
    %1060 = vmatprep.subr.mxu0 0.0
    %1061 = vmatpush1.msra.mxu0 0.0
    %1062 = vmatprep.subr.mxu0 0.0
    %1063 = vmatpush1.msra.mxu0 0.0
    %1064 = vmatprep.subr.mxu0 0.0
    %1065 = vmatpush1.msra.mxu0 0.0
    %1066 = vmatprep.subr.mxu0 0.0
    %1067 = vmatpush1.msra.mxu0 0.0
    %1068 = vmatprep.subr.mxu0 0.0
    %1069 = vmatpush1.msra.mxu0 0.0
    %1070 = vmatprep.mubr.f32.mxu0 0.0
    %1071 = vmatmul.mubr.f32.gmra.mrb[0].mxu0 %v1001
    %v1072 = vpop.f32.mrb[0].mxu0
    %v1073 = vadd.f32 0.0, %v1072
    %v1074 = vpop.f32.mrb[0].mxu0
    %1075 = vmatprep.mubr.f32.mxu0 0.0
    %1076 = vmatmul.mubr.f32.gmra.mrb[0].mxu0 %v1004
    %v1077 = vpop.f32.mrb[0].mxu0
    %v1078 = vadd.f32 0.0, %v1077
    %v1079 = vpop.f32.mrb[0].mxu0
    %1080 = vdwg.mxu0
    %1083 = vrot.lane.b32.xlu0 %v673, 8
    %v1084 = vpop.permute.xlu0 %1083
    %1085 = vrot.lane.b32.xlu0 %v678, 8
    %v1086 = vpop.permute.xlu0 %1085
    %1091 = vrot.lane.b32.xlu0 %v873, 16
    %v1092 = vpop.permute.xlu0 %1091
    %1093 = vrot.lane.b32.xlu0 %v878, 16
    %v1094 = vpop.permute.xlu0 %1093
    %1099 = vrot.lane.b32.xlu0 %v1073, 24
    %v1100 = vpop.permute.xlu0 %1099
    %1101 = vrot.lane.b32.xlu0 %v1078, 24
    %v1102 = vpop.permute.xlu0 %1101
    %v1105 = vsel %vm289, %v471, %v1084
    %v1106 = vsel %vm289, %v476, %v1086
    %v1107 = vsel %vm375, %v1105, %v1092
    %v1108 = vsel %vm375, %v1106, %v1094
    %vm1109 = vcmask 195584
    %v1110 = vsel %vm1109, %v1107, %v1100
    %v1111 = vsel %vm1109, %v1108, %v1102
    %v1112 = vld [vmem:[%s8] sm:$0xff]
    %v1113 = vld [vmem:[%s3] sm:$0xff]
    %v1114 = vld [vmem:[%s3 + $0x8] sm:$0xff]
    %v1115 = vld [vmem:[%s3 + $0x10] sm:$0xff]
    %v1116 = vld [vmem:[%s3 + $0x18] sm:$0xff]
    %v1117 = vlaneseq
    %v1118 = vshrl.u32 %v1117, 7
    %v1119 = vsub.s32 0, %v1118
    %v1120 = vrot.slane %v1112, %v1119
    %v1122 = vsel %vm144, %v1110, 0
    %v1125 = vsel %vm144, %v1111, 0
    %1127 = vmatprep.subr.mxu0 0.0
    %1128 = vmatpush1.msra.mxu0 %v1113
    %1129 = vmatprep.subr.mxu0 0.0
    %1130 = vmatpush1.msra.mxu0 %v1114
    %1131 = vmatprep.subr.mxu0 0.0
    %1132 = vmatpush1.msra.mxu0 %v1115
    %1133 = vmatprep.subr.mxu0 0.0
    %1134 = vmatpush1.msra.mxu0 %v1116
    %1135 = vmatprep.subr.mxu0 0.0
    %1136 = vmatpush1.msra.mxu0 0.0
    %1137 = vmatprep.subr.mxu0 0.0
    %1138 = vmatpush1.msra.mxu0 0.0
    %1139 = vmatprep.subr.mxu0 0.0
    %1140 = vmatpush1.msra.mxu0 0.0
    %1141 = vmatprep.subr.mxu0 0.0
    %1142 = vmatpush1.msra.mxu0 0.0
    %1143 = vmatprep.subr.mxu0 0.0
    %1144 = vmatpush1.msra.mxu0 0.0
    %1145 = vmatprep.subr.mxu0 0.0
    %1146 = vmatpush1.msra.mxu0 0.0
    %1147 = vmatprep.subr.mxu0 0.0
    %1148 = vmatpush1.msra.mxu0 0.0
    %1149 = vmatprep.subr.mxu0 0.0
    %1150 = vmatpush1.msra.mxu0 0.0
    %1151 = vmatprep.subr.mxu0 0.0
    %1152 = vmatpush1.msra.mxu0 0.0
    %1153 = vmatprep.subr.mxu0 0.0
    %1154 = vmatpush1.msra.mxu0 0.0
    %1155 = vmatprep.subr.mxu0 0.0
    %1156 = vmatpush1.msra.mxu0 0.0
    %1157 = vmatprep.subr.mxu0 0.0
    %1158 = vmatpush1.msra.mxu0 0.0
    %1159 = vmatprep.subr.mxu0 0.0
    %1160 = vmatpush1.msra.mxu0 0.0
    %1161 = vmatprep.subr.mxu0 0.0
    %1162 = vmatpush1.msra.mxu0 0.0
    %1163 = vmatprep.subr.mxu0 0.0
    %1164 = vmatpush1.msra.mxu0 0.0
    %1165 = vmatprep.subr.mxu0 0.0
    %1166 = vmatpush1.msra.mxu0 0.0
    %1167 = vmatprep.subr.mxu0 0.0
    %1168 = vmatpush1.msra.mxu0 0.0
    %1169 = vmatprep.subr.mxu0 0.0
    %1170 = vmatpush1.msra.mxu0 0.0
    %1171 = vmatprep.subr.mxu0 0.0
    %1172 = vmatpush1.msra.mxu0 0.0
    %1173 = vmatprep.subr.mxu0 0.0
    %1174 = vmatpush1.msra.mxu0 0.0
    %1175 = vmatprep.subr.mxu0 0.0
    %1176 = vmatpush1.msra.mxu0 0.0
    %1177 = vmatprep.subr.mxu0 0.0
    %1178 = vmatpush1.msra.mxu0 0.0
    %1179 = vmatprep.subr.mxu0 0.0
    %1180 = vmatpush1.msra.mxu0 0.0
    %1181 = vmatprep.subr.mxu0 0.0
    %1182 = vmatpush1.msra.mxu0 0.0
    %1183 = vmatprep.subr.mxu0 0.0
    %1184 = vmatpush1.msra.mxu0 0.0
    %1185 = vmatprep.subr.mxu0 0.0
    %1186 = vmatpush1.msra.mxu0 0.0
    %1187 = vmatprep.subr.mxu0 0.0
    %1188 = vmatpush1.msra.mxu0 0.0
    %1189 = vmatprep.subr.mxu0 0.0
    %1190 = vmatpush1.msra.mxu0 0.0
    %1191 = vmatprep.mubr.f32.mxu0 0.0
    %1192 = vmatmul.mubr.f32.gmra.mrb[0].mxu0 %v1122
    %v1193 = vpop.f32.mrb[0].mxu0
    %v1194 = vadd.f32 %v1120, %v1193
    %v1195 = vpop.f32.mrb[0].mxu0
    %1196 = vmatprep.mubr.f32.mxu0 0.0
    %1197 = vmatmul.mubr.f32.gmra.mrb[0].mxu0 %v1125
    %v1198 = vpop.f32.mrb[0].mxu0
    %v1199 = vadd.f32 %v1120, %v1198
    %v1200 = vpop.f32.mrb[0].mxu0
    %1201 = vdwg.mxu0
    %v1204 = vcombine.high %v1194, %v1194
    %v1206 = vunpack.c.l.s4 1983009808
    %v1207 = vunpack.c.0.s8 %v1206
    %v1208 = vlaneseq
    %v1209 = vshrl.u32 %v1208, 7
    %v1210 = vsub.s32 %v1207, %v1209
    %v1211 = vrot.slane %v1194, %v1210
    %v1213 = vunpack.c.l.s4 1983009808
    %v1214 = vunpack.c.0.s8 %v1213
    %v1215 = vlaneseq
    %v1216 = vshrl.u32 %v1215, 7
    %v1217 = vsub.s32 %v1214, %v1216
    %v1218 = vrot.slane %v1204, %v1217
    %v1219 = vcombine.high %v1211, %v1211
    %v1220 = vcombine.high %v1218, %v1218
    %v1221 = vcombine.high %v1199, %v1199
    %v1223 = vunpack.c.l.s4 1983009808
    %v1224 = vunpack.c.0.s8 %v1223
    %v1225 = vlaneseq
    %v1226 = vshrl.u32 %v1225, 7
    %v1227 = vsub.s32 %v1224, %v1226
    %v1228 = vrot.slane %v1199, %v1227
    %v1230 = vunpack.c.l.s4 1983009808
    %v1231 = vunpack.c.0.s8 %v1230
    %v1232 = vlaneseq
    %v1233 = vshrl.u32 %v1232, 7
    %v1234 = vsub.s32 %v1231, %v1233
    %v1235 = vrot.slane %v1221, %v1234
    %v1236 = vcombine.high %v1228, %v1228
    %v1237 = vcombine.high %v1235, %v1235
    %v1246 = vadd.f32 %v74, %v1211
    %v1247 = vadd.f32 %v75, %v1219
    %v1248 = vadd.f32 %v76, %v1218
    %v1249 = vadd.f32 %v77, %v1220
    %v1250 = vadd.f32 %v78, %v1228
    %v1251 = vadd.f32 %v79, %v1236
    %v1252 = vadd.f32 %v80, %v1235
    %v1253 = vadd.f32 %v81, %v1237
    %v1262 = vcombine.low %v1246, %v1247
    %v1263 = vcombine.low %v1248, %v1249
    %v1265 = vunpack.c.l.s4 1983009808
    %v1266 = vunpack.c.0.s8 %v1265
    %v1267 = vlaneseq
    %v1268 = vshrl.u32 %v1267, 7
    %v1269 = vsub.s32 %v1266, %v1268
    %v1270 = vrot.slane %v1262, %v1269
    %v1272 = vunpack.c.l.s4 1983009808
    %v1273 = vunpack.c.0.s8 %v1272
    %v1274 = vlaneseq
    %v1275 = vshrl.u32 %v1274, 7
    %v1276 = vsub.s32 %v1273, %v1275
    %v1277 = vrot.slane %v1263, %v1276
    %v1278 = vcombine.low %v1270, %v1277
    %v1279 = vcombine.low %v1250, %v1251
    %v1280 = vcombine.low %v1252, %v1253
    %v1282 = vunpack.c.l.s4 1983009808
    %v1283 = vunpack.c.0.s8 %v1282
    %v1284 = vlaneseq
    %v1285 = vshrl.u32 %v1284, 7
    %v1286 = vsub.s32 %v1283, %v1285
    %v1287 = vrot.slane %v1279, %v1286
    %v1289 = vunpack.c.l.s4 1983009808
    %v1290 = vunpack.c.0.s8 %v1289
    %v1291 = vlaneseq
    %v1292 = vshrl.u32 %v1291, 7
    %v1293 = vsub.s32 %v1290, %v1292
    %v1294 = vrot.slane %v1280, %v1293
    %v1295 = vcombine.low %v1287, %v1294
    %v1298 = vsel %vm144, %v1278, 0.0
    %1299 = vadd.xlane.f32.xlu0 %v1298
    %v1300 = vpop.xlane.xlu0 %1299
    %v1301 = vsel %vm144, %v1295, 0.0
    %1302 = vadd.xlane.f32.xlu0 %v1301
    %v1303 = vpop.xlane.xlu0 %1302
    %v1304 = vrcp.pop 32.0
    %v1305 = vmul.f32 %v1300, %v1304
    %v1306 = vmul.f32 %v1303, %v1304
    %v1310 = vunpack.c.l.s4 269488144
    %v1311 = vunpack.c.0.s8 %v1310
    %v1312 = vlaneseq
    %v1313 = vshrl.u32 %v1312, 7
    %v1314 = vsub.s32 %v1311, %v1313
    %v1315 = vrot.slane %v1305, %v1314
    %v1317 = vunpack.c.l.s4 842150450
    %v1318 = vunpack.c.0.s8 %v1317
    %v1319 = vlaneseq
    %v1320 = vshrl.u32 %v1319, 7
    %v1321 = vsub.s32 %v1318, %v1320
    %v1322 = vrot.slane %v1305, %v1321
    %v1324 = vunpack.c.l.s4 1414812756
    %v1325 = vunpack.c.0.s8 %v1324
    %v1326 = vlaneseq
    %v1327 = vshrl.u32 %v1326, 7
    %v1328 = vsub.s32 %v1325, %v1327
    %v1329 = vrot.slane %v1305, %v1328
    %v1331 = vunpack.c.l.s4 1987475062
    %v1332 = vunpack.c.0.s8 %v1331
    %v1333 = vlaneseq
    %v1334 = vshrl.u32 %v1333, 7
    %v1335 = vsub.s32 %v1332, %v1334
    %v1336 = vrot.slane %v1305, %v1335
    %v1338 = vunpack.c.l.s4 269488144
    %v1339 = vunpack.c.0.s8 %v1338
    %v1340 = vlaneseq
    %v1341 = vshrl.u32 %v1340, 7
    %v1342 = vsub.s32 %v1339, %v1341
    %v1343 = vrot.slane %v1306, %v1342
    %v1345 = vunpack.c.l.s4 842150450
    %v1346 = vunpack.c.0.s8 %v1345
    %v1347 = vlaneseq
    %v1348 = vshrl.u32 %v1347, 7
    %v1349 = vsub.s32 %v1346, %v1348
    %v1350 = vrot.slane %v1306, %v1349
    %v1352 = vunpack.c.l.s4 1414812756
    %v1353 = vunpack.c.0.s8 %v1352
    %v1354 = vlaneseq
    %v1355 = vshrl.u32 %v1354, 7
    %v1356 = vsub.s32 %v1353, %v1355
    %v1357 = vrot.slane %v1306, %v1356
    %v1359 = vunpack.c.l.s4 1987475062
    %v1360 = vunpack.c.0.s8 %v1359
    %v1361 = vlaneseq
    %v1362 = vshrl.u32 %v1361, 7
    %v1363 = vsub.s32 %v1360, %v1362
    %v1364 = vrot.slane %v1306, %v1363
    %v1373 = vsub.f32 %v1246, %v1315
    %v1374 = vsub.f32 %v1247, %v1322
    %v1375 = vsub.f32 %v1248, %v1329
    %v1376 = vsub.f32 %v1249, %v1336
    %v1377 = vsub.f32 %v1250, %v1343
    %v1378 = vsub.f32 %v1251, %v1350
    %v1379 = vsub.f32 %v1252, %v1357
    %v1380 = vsub.f32 %v1253, %v1364
    %v1381 = vmul.f32 %v1373, %v1373
    %v1382 = vmul.f32 %v1374, %v1374
    %v1383 = vmul.f32 %v1375, %v1375
    %v1384 = vmul.f32 %v1376, %v1376
    %v1385 = vmul.f32 %v1377, %v1377
    %v1386 = vmul.f32 %v1378, %v1378
    %v1387 = vmul.f32 %v1379, %v1379
    %v1388 = vmul.f32 %v1380, %v1380
    %v1397 = vcombine.low %v1381, %v1382
    %v1398 = vcombine.low %v1383, %v1384
    %v1400 = vunpack.c.l.s4 1983009808
    %v1401 = vunpack.c.0.s8 %v1400
    %v1402 = vlaneseq
    %v1403 = vshrl.u32 %v1402, 7
    %v1404 = vsub.s32 %v1401, %v1403
    %v1405 = vrot.slane %v1397, %v1404
    %v1407 = vunpack.c.l.s4 1983009808
    %v1408 = vunpack.c.0.s8 %v1407
    %v1409 = vlaneseq
    %v1410 = vshrl.u32 %v1409, 7
    %v1411 = vsub.s32 %v1408, %v1410
    %v1412 = vrot.slane %v1398, %v1411
    %v1413 = vcombine.low %v1405, %v1412
    %v1414 = vcombine.low %v1385, %v1386
    %v1415 = vcombine.low %v1387, %v1388
    %v1417 = vunpack.c.l.s4 1983009808
    %v1418 = vunpack.c.0.s8 %v1417
    %v1419 = vlaneseq
    %v1420 = vshrl.u32 %v1419, 7
    %v1421 = vsub.s32 %v1418, %v1420
    %v1422 = vrot.slane %v1414, %v1421
    %v1424 = vunpack.c.l.s4 1983009808
    %v1425 = vunpack.c.0.s8 %v1424
    %v1426 = vlaneseq
    %v1427 = vshrl.u32 %v1426, 7
    %v1428 = vsub.s32 %v1425, %v1427
    %v1429 = vrot.slane %v1415, %v1428
    %v1430 = vcombine.low %v1422, %v1429
    %v1433 = vsel %vm144, %v1413, 0.0
    %1434 = vadd.xlane.f32.xlu0 %v1433
    %v1435 = vpop.xlane.xlu0 %1434
    %v1436 = vsel %vm144, %v1430, 0.0
    %1437 = vadd.xlane.f32.xlu0 %v1436
    %v1438 = vpop.xlane.xlu0 %1437
    %v1439 = vmul.f32 %v1435, %v1304
    %v1440 = vmul.f32 %v1438, %v1304
    %v1441 = vadd.f32 %v1439, 1e-05
    %v1442 = vadd.f32 %v1440, 1e-05
    %v1443 = vrsqrt.pop %v1441
    %v1444 = vrsqrt.pop %v1442
    %v1448 = vunpack.c.l.s4 269488144
    %v1449 = vunpack.c.0.s8 %v1448
    %v1450 = vlaneseq
    %v1451 = vshrl.u32 %v1450, 7
    %v1452 = vsub.s32 %v1449, %v1451
    %v1453 = vrot.slane %v1443, %v1452
    %v1455 = vunpack.c.l.s4 842150450
    %v1456 = vunpack.c.0.s8 %v1455
    %v1457 = vlaneseq
    %v1458 = vshrl.u32 %v1457, 7
    %v1459 = vsub.s32 %v1456, %v1458
    %v1460 = vrot.slane %v1443, %v1459
    %v1462 = vunpack.c.l.s4 1414812756
    %v1463 = vunpack.c.0.s8 %v1462
    %v1464 = vlaneseq
    %v1465 = vshrl.u32 %v1464, 7
    %v1466 = vsub.s32 %v1463, %v1465
    %v1467 = vrot.slane %v1443, %v1466
    %v1469 = vunpack.c.l.s4 1987475062
    %v1470 = vunpack.c.0.s8 %v1469
    %v1471 = vlaneseq
    %v1472 = vshrl.u32 %v1471, 7
    %v1473 = vsub.s32 %v1470, %v1472
    %v1474 = vrot.slane %v1443, %v1473
    %v1476 = vunpack.c.l.s4 269488144
    %v1477 = vunpack.c.0.s8 %v1476
    %v1478 = vlaneseq
    %v1479 = vshrl.u32 %v1478, 7
    %v1480 = vsub.s32 %v1477, %v1479
    %v1481 = vrot.slane %v1444, %v1480
    %v1483 = vunpack.c.l.s4 842150450
    %v1484 = vunpack.c.0.s8 %v1483
    %v1485 = vlaneseq
    %v1486 = vshrl.u32 %v1485, 7
    %v1487 = vsub.s32 %v1484, %v1486
    %v1488 = vrot.slane %v1444, %v1487
    %v1490 = vunpack.c.l.s4 1414812756
    %v1491 = vunpack.c.0.s8 %v1490
    %v1492 = vlaneseq
    %v1493 = vshrl.u32 %v1492, 7
    %v1494 = vsub.s32 %v1491, %v1493
    %v1495 = vrot.slane %v1444, %v1494
    %v1497 = vunpack.c.l.s4 1987475062
    %v1498 = vunpack.c.0.s8 %v1497
    %v1499 = vlaneseq
    %v1500 = vshrl.u32 %v1499, 7
    %v1501 = vsub.s32 %v1498, %v1500
    %v1502 = vrot.slane %v1444, %v1501
    %v1511 = vmul.f32 %v1373, %v1453
    %v1512 = vmul.f32 %v1374, %v1460
    %v1513 = vmul.f32 %v1375, %v1467
    %v1514 = vmul.f32 %v1376, %v1474
    %v1515 = vmul.f32 %v1377, %v1481
    %v1516 = vmul.f32 %v1378, %v1488
    %v1517 = vmul.f32 %v1379, %v1495
    %v1518 = vmul.f32 %v1380, %v1502
    %v1519 = vlaneseq
    %v1520 = vshrl.u32 %v1519, 7
    %v1521 = vsub.s32 1, %v1520
    %v1522 = vrot.slane %v1112, %v1521
    %v1524 = vcombine.high %v1522, %v1522
    %v1526 = vunpack.c.l.s4 1983009808
    %v1527 = vunpack.c.0.s8 %v1526
    %v1528 = vlaneseq
    %v1529 = vshrl.u32 %v1528, 7
    %v1530 = vsub.s32 %v1527, %v1529
    %v1531 = vrot.slane %v1522, %v1530
    %v1533 = vunpack.c.l.s4 1983009808
    %v1534 = vunpack.c.0.s8 %v1533
    %v1535 = vlaneseq
    %v1536 = vshrl.u32 %v1535, 7
    %v1537 = vsub.s32 %v1534, %v1536
    %v1538 = vrot.slane %v1524, %v1537
    %v1539 = vcombine.high %v1531, %v1531
    %v1540 = vcombine.high %v1538, %v1538
    %v1545 = vmul.f32 %v1511, %v1531
    %v1546 = vmul.f32 %v1512, %v1539
    %v1547 = vmul.f32 %v1513, %v1538
    %v1548 = vmul.f32 %v1514, %v1540
    %v1549 = vmul.f32 %v1515, %v1531
    %v1550 = vmul.f32 %v1516, %v1539
    %v1551 = vmul.f32 %v1517, %v1538
    %v1552 = vmul.f32 %v1518, %v1540
    %v1553 = vlaneseq
    %v1554 = vshrl.u32 %v1553, 7
    %v1555 = vsub.s32 2, %v1554
    %v1556 = vrot.slane %v1112, %v1555
    %v1558 = vcombine.high %v1556, %v1556
    %v1560 = vunpack.c.l.s4 1983009808
    %v1561 = vunpack.c.0.s8 %v1560
    %v1562 = vlaneseq
    %v1563 = vshrl.u32 %v1562, 7
    %v1564 = vsub.s32 %v1561, %v1563
    %v1565 = vrot.slane %v1556, %v1564
    %v1567 = vunpack.c.l.s4 1983009808
    %v1568 = vunpack.c.0.s8 %v1567
    %v1569 = vlaneseq
    %v1570 = vshrl.u32 %v1569, 7
    %v1571 = vsub.s32 %v1568, %v1570
    %v1572 = vrot.slane %v1558, %v1571
    %v1573 = vcombine.high %v1565, %v1565
    %v1574 = vcombine.high %v1572, %v1572
    %v1579 = vadd.f32 %v1545, %v1565
    %v1580 = vadd.f32 %v1546, %v1573
    %v1581 = vadd.f32 %v1547, %v1572
    %v1582 = vadd.f32 %v1548, %v1574
    %v1583 = vadd.f32 %v1549, %v1565
    %v1584 = vadd.f32 %v1550, %v1573
    %v1585 = vadd.f32 %v1551, %v1572
    %v1586 = vadd.f32 %v1552, %v1574
    %v1587 = vld [vmem:[#allocation5] sm:$0xff]
    %v1588 = vld [vmem:[#allocation5 + $0x8] sm:$0xff]
    %v1589 = vld [vmem:[#allocation5 + $0x10] sm:$0xff]
    %v1590 = vld [vmem:[#allocation5 + $0x18] sm:$0xff]
    %v1591 = vlaneseq
    %v1592 = vshrl.u32 %v1591, 7
    %v1593 = vsub.s32 6, %v1592
    %v1594 = vrot.slane %v1112, %v1593
    %v1603 = vcombine.low %v1579, %v1580
    %v1604 = vcombine.low %v1581, %v1582
    %v1606 = vunpack.c.l.s4 1983009808
    %v1607 = vunpack.c.0.s8 %v1606
    %v1608 = vlaneseq
    %v1609 = vshrl.u32 %v1608, 7
    %v1610 = vsub.s32 %v1607, %v1609
    %v1611 = vrot.slane %v1603, %v1610
    %v1613 = vunpack.c.l.s4 1983009808
    %v1614 = vunpack.c.0.s8 %v1613
    %v1615 = vlaneseq
    %v1616 = vshrl.u32 %v1615, 7
    %v1617 = vsub.s32 %v1614, %v1616
    %v1618 = vrot.slane %v1604, %v1617
    %v1619 = vcombine.low %v1611, %v1618
    %v1620 = vcombine.low %v1583, %v1584
    %v1621 = vcombine.low %v1585, %v1586
    %v1623 = vunpack.c.l.s4 1983009808
    %v1624 = vunpack.c.0.s8 %v1623
    %v1625 = vlaneseq
    %v1626 = vshrl.u32 %v1625, 7
    %v1627 = vsub.s32 %v1624, %v1626
    %v1628 = vrot.slane %v1620, %v1627
    %v1630 = vunpack.c.l.s4 1983009808
    %v1631 = vunpack.c.0.s8 %v1630
    %v1632 = vlaneseq
    %v1633 = vshrl.u32 %v1632, 7
    %v1634 = vsub.s32 %v1631, %v1633
    %v1635 = vrot.slane %v1621, %v1634
    %v1636 = vcombine.low %v1628, %v1635
    %v1637 = vsel %vm144, %v1619, 0
    %v1639 = vsel %vm144, %v1636, 0
    %1641 = vmatprep.subr.mxu0 0.0
    %1642 = vmatpush1.msra.mxu0 %v1587
    %1643 = vmatprep.subr.mxu0 0.0
    %1644 = vmatpush1.msra.mxu0 %v1588
    %1645 = vmatprep.subr.mxu0 0.0
    %1646 = vmatpush1.msra.mxu0 %v1589
    %1647 = vmatprep.subr.mxu0 0.0
    %1648 = vmatpush1.msra.mxu0 %v1590
    %1649 = vmatprep.subr.mxu0 0.0
    %1650 = vmatpush1.msra.mxu0 0.0
    %1651 = vmatprep.subr.mxu0 0.0
    %1652 = vmatpush1.msra.mxu0 0.0
    %1653 = vmatprep.subr.mxu0 0.0
    %1654 = vmatpush1.msra.mxu0 0.0
    %1655 = vmatprep.subr.mxu0 0.0
    %1656 = vmatpush1.msra.mxu0 0.0
    %1657 = vmatprep.subr.mxu0 0.0
    %1658 = vmatpush1.msra.mxu0 0.0
    %1659 = vmatprep.subr.mxu0 0.0
    %1660 = vmatpush1.msra.mxu0 0.0
    %1661 = vmatprep.subr.mxu0 0.0
    %1662 = vmatpush1.msra.mxu0 0.0
    %1663 = vmatprep.subr.mxu0 0.0
    %1664 = vmatpush1.msra.mxu0 0.0
    %1665 = vmatprep.subr.mxu0 0.0
    %1666 = vmatpush1.msra.mxu0 0.0
    %1667 = vmatprep.subr.mxu0 0.0
    %1668 = vmatpush1.msra.mxu0 0.0
    %1669 = vmatprep.subr.mxu0 0.0
    %1670 = vmatpush1.msra.mxu0 0.0
    %1671 = vmatprep.subr.mxu0 0.0
    %1672 = vmatpush1.msra.mxu0 0.0
    %1673 = vmatprep.subr.mxu0 0.0
    %1674 = vmatpush1.msra.mxu0 0.0
    %1675 = vmatprep.subr.mxu0 0.0
    %1676 = vmatpush1.msra.mxu0 0.0
    %1677 = vmatprep.subr.mxu0 0.0
    %1678 = vmatpush1.msra.mxu0 0.0
    %1679 = vmatprep.subr.mxu0 0.0
    %1680 = vmatpush1.msra.mxu0 0.0
    %1681 = vmatprep.subr.mxu0 0.0
    %1682 = vmatpush1.msra.mxu0 0.0
    %1683 = vmatprep.subr.mxu0 0.0
    %1684 = vmatpush1.msra.mxu0 0.0
    %1685 = vmatprep.subr.mxu0 0.0
    %1686 = vmatpush1.msra.mxu0 0.0
    %1687 = vmatprep.subr.mxu0 0.0
    %1688 = vmatpush1.msra.mxu0 0.0
    %1689 = vmatprep.subr.mxu0 0.0
    %1690 = vmatpush1.msra.mxu0 0.0
    %1691 = vmatprep.subr.mxu0 0.0
    %1692 = vmatpush1.msra.mxu0 0.0
    %1693 = vmatprep.subr.mxu0 0.0
    %1694 = vmatpush1.msra.mxu0 0.0
    %1695 = vmatprep.subr.mxu0 0.0
    %1696 = vmatpush1.msra.mxu0 0.0
    %1697 = vmatprep.subr.mxu0 0.0
    %1698 = vmatpush1.msra.mxu0 0.0
    %1699 = vmatprep.subr.mxu0 0.0
    %1700 = vmatpush1.msra.mxu0 0.0
    %1701 = vmatprep.subr.mxu0 0.0
    %1702 = vmatpush1.msra.mxu0 0.0
    %1703 = vmatprep.subr.mxu0 0.0
    %1704 = vmatpush1.msra.mxu0 0.0
    %1705 = vmatprep.mubr.f32.mxu0 0.0
    %1706 = vmatmul.mubr.f32.gmra.mrb[0].mxu0 %v1637
    %v1707 = vpop.f32.mrb[0].mxu0
    %v1708 = vadd.f32 %v1594, %v1707
    %v1709 = vpop.f32.mrb[0].mxu0
    %1710 = vmatprep.mubr.f32.mxu0 0.0
    %1711 = vmatmul.mubr.f32.gmra.mrb[0].mxu0 %v1639
    %v1712 = vpop.f32.mrb[0].mxu0
    %v1713 = vadd.f32 %v1594, %v1712
    %v1714 = vpop.f32.mrb[0].mxu0
    %1715 = vdwg.mxu0
    %v1716 = vmul.f32 %v1708, 0.5
    %v1717 = vmul.f32 %v1713, 0.5
    %v1718 = vmul.f32 %v1708, 0.70710677
    %v1719 = vmul.f32 %v1713, 0.70710677
    %v1720 = verf.f32.pop %v1718
    %v1721 = verf.f32.pop %v1719
    %v1722 = vadd.f32 %v1720, 1.0
    %v1723 = vadd.f32 %v1721, 1.0
    %v1724 = vmul.f32 %v1716, %v1722
    %v1725 = vmul.f32 %v1717, %v1723
    %v1726 = vld [vmem:[%s5] sm:$0xff]
    %v1727 = vld [vmem:[%s5 + $0x8] sm:$0xff]
    %v1728 = vld [vmem:[%s5 + $0x10] sm:$0xff]
    %v1729 = vld [vmem:[%s5 + $0x18] sm:$0xff]
    %v1730 = vld [vmem:[%s5 + $0x20] sm:$0xff]
    %v1731 = vld [vmem:[%s5 + $0x28] sm:$0xff]
    %v1732 = vld [vmem:[%s5 + $0x30] sm:$0xff]
    %v1733 = vld [vmem:[%s5 + $0x38] sm:$0xff]
    %v1734 = vlaneseq
    %v1735 = vshrl.u32 %v1734, 7
    %v1736 = vsub.s32 5, %v1735
    %v1737 = vrot.slane %v1112, %v1736
    %vm1738 = vcmask 523264
    %v1740 = vsel %vm1738, %v1724, 0
    %v1743 = vsel %vm1738, %v1725, 0
    %1745 = vmatprep.subr.mxu0 0.0
    %1746 = vmatpush1.msra.mxu0 %v1726
    %1747 = vmatprep.subr.mxu0 0.0
    %1748 = vmatpush1.msra.mxu0 %v1727
    %1749 = vmatprep.subr.mxu0 0.0
    %1750 = vmatpush1.msra.mxu0 %v1728
    %1751 = vmatprep.subr.mxu0 0.0
    %1752 = vmatpush1.msra.mxu0 %v1729
    %1753 = vmatprep.subr.mxu0 0.0
    %1754 = vmatpush1.msra.mxu0 %v1730
    %1755 = vmatprep.subr.mxu0 0.0
    %1756 = vmatpush1.msra.mxu0 %v1731
    %1757 = vmatprep.subr.mxu0 0.0
    %1758 = vmatpush1.msra.mxu0 %v1732
    %1759 = vmatprep.subr.mxu0 0.0
    %1760 = vmatpush1.msra.mxu0 %v1733
    %1761 = vmatprep.subr.mxu0 0.0
    %1762 = vmatpush1.msra.mxu0 0.0
    %1763 = vmatprep.subr.mxu0 0.0
    %1764 = vmatpush1.msra.mxu0 0.0
    %1765 = vmatprep.subr.mxu0 0.0
    %1766 = vmatpush1.msra.mxu0 0.0
    %1767 = vmatprep.subr.mxu0 0.0
    %1768 = vmatpush1.msra.mxu0 0.0
    %1769 = vmatprep.subr.mxu0 0.0
    %1770 = vmatpush1.msra.mxu0 0.0
    %1771 = vmatprep.subr.mxu0 0.0
    %1772 = vmatpush1.msra.mxu0 0.0
    %1773 = vmatprep.subr.mxu0 0.0
    %1774 = vmatpush1.msra.mxu0 0.0
    %1775 = vmatprep.subr.mxu0 0.0
    %1776 = vmatpush1.msra.mxu0 0.0
    %1777 = vmatprep.subr.mxu0 0.0
    %1778 = vmatpush1.msra.mxu0 0.0
    %1779 = vmatprep.subr.mxu0 0.0
    %1780 = vmatpush1.msra.mxu0 0.0
    %1781 = vmatprep.subr.mxu0 0.0
    %1782 = vmatpush1.msra.mxu0 0.0
    %1783 = vmatprep.subr.mxu0 0.0
    %1784 = vmatpush1.msra.mxu0 0.0
    %1785 = vmatprep.subr.mxu0 0.0
    %1786 = vmatpush1.msra.mxu0 0.0
    %1787 = vmatprep.subr.mxu0 0.0
    %1788 = vmatpush1.msra.mxu0 0.0
    %1789 = vmatprep.subr.mxu0 0.0
    %1790 = vmatpush1.msra.mxu0 0.0
    %1791 = vmatprep.subr.mxu0 0.0
    %1792 = vmatpush1.msra.mxu0 0.0
    %1793 = vmatprep.subr.mxu0 0.0
    %1794 = vmatpush1.msra.mxu0 0.0
    %1795 = vmatprep.subr.mxu0 0.0
    %1796 = vmatpush1.msra.mxu0 0.0
    %1797 = vmatprep.subr.mxu0 0.0
    %1798 = vmatpush1.msra.mxu0 0.0
    %1799 = vmatprep.subr.mxu0 0.0
    %1800 = vmatpush1.msra.mxu0 0.0
    %1801 = vmatprep.subr.mxu0 0.0
    %1802 = vmatpush1.msra.mxu0 0.0
    %1803 = vmatprep.subr.mxu0 0.0
    %1804 = vmatpush1.msra.mxu0 0.0
    %1805 = vmatprep.subr.mxu0 0.0
    %1806 = vmatpush1.msra.mxu0 0.0
    %1807 = vmatprep.subr.mxu0 0.0
    %1808 = vmatpush1.msra.mxu0 0.0
    %1809 = vmatprep.mubr.f32.mxu0 0.0
    %1810 = vmatmul.mubr.f32.gmra.mrb[0].mxu0 %v1740
    %v1811 = vpop.f32.mrb[0].mxu0
    %v1812 = vadd.f32 %v1737, %v1811
    %v1813 = vpop.f32.mrb[0].mxu0
    %1814 = vmatprep.mubr.f32.mxu0 0.0
    %1815 = vmatmul.mubr.f32.gmra.mrb[0].mxu0 %v1743
    %v1816 = vpop.f32.mrb[0].mxu0
    %v1817 = vadd.f32 %v1737, %v1816
    %v1818 = vpop.f32.mrb[0].mxu0
    %1819 = vdwg.mxu0
    %v1822 = vcombine.high %v1812, %v1812
    %v1824 = vunpack.c.l.s4 1983009808
    %v1825 = vunpack.c.0.s8 %v1824
    %v1826 = vlaneseq
    %v1827 = vshrl.u32 %v1826, 7
    %v1828 = vsub.s32 %v1825, %v1827
    %v1829 = vrot.slane %v1812, %v1828
    %v1831 = vunpack.c.l.s4 1983009808
    %v1832 = vunpack.c.0.s8 %v1831
    %v1833 = vlaneseq
    %v1834 = vshrl.u32 %v1833, 7
    %v1835 = vsub.s32 %v1832, %v1834
    %v1836 = vrot.slane %v1822, %v1835
    %v1837 = vcombine.high %v1829, %v1829
    %v1838 = vcombine.high %v1836, %v1836
    %v1839 = vcombine.high %v1817, %v1817
    %v1841 = vunpack.c.l.s4 1983009808
    %v1842 = vunpack.c.0.s8 %v1841
    %v1843 = vlaneseq
    %v1844 = vshrl.u32 %v1843, 7
    %v1845 = vsub.s32 %v1842, %v1844
    %v1846 = vrot.slane %v1817, %v1845
    %v1848 = vunpack.c.l.s4 1983009808
    %v1849 = vunpack.c.0.s8 %v1848
    %v1850 = vlaneseq
    %v1851 = vshrl.u32 %v1850, 7
    %v1852 = vsub.s32 %v1849, %v1851
    %v1853 = vrot.slane %v1839, %v1852
    %v1854 = vcombine.high %v1846, %v1846
    %v1855 = vcombine.high %v1853, %v1853
    %v1864 = vadd.f32 %v1579, %v1829
    %v1865 = vadd.f32 %v1580, %v1837
    %v1866 = vadd.f32 %v1581, %v1836
    %v1867 = vadd.f32 %v1582, %v1838
    %v1868 = vadd.f32 %v1583, %v1846
    %v1869 = vadd.f32 %v1584, %v1854
    %v1870 = vadd.f32 %v1585, %v1853
    %v1871 = vadd.f32 %v1586, %v1855
    %v1880 = vcombine.low %v1864, %v1865
    %v1881 = vcombine.low %v1866, %v1867
    %v1883 = vunpack.c.l.s4 1983009808
    %v1884 = vunpack.c.0.s8 %v1883
    %v1885 = vlaneseq
    %v1886 = vshrl.u32 %v1885, 7
    %v1887 = vsub.s32 %v1884, %v1886
    %v1888 = vrot.slane %v1880, %v1887
    %v1890 = vunpack.c.l.s4 1983009808
    %v1891 = vunpack.c.0.s8 %v1890
    %v1892 = vlaneseq
    %v1893 = vshrl.u32 %v1892, 7
    %v1894 = vsub.s32 %v1891, %v1893
    %v1895 = vrot.slane %v1881, %v1894
    %v1896 = vcombine.low %v1888, %v1895
    %v1897 = vcombine.low %v1868, %v1869
    %v1898 = vcombine.low %v1870, %v1871
    %v1900 = vunpack.c.l.s4 1983009808
    %v1901 = vunpack.c.0.s8 %v1900
    %v1902 = vlaneseq
    %v1903 = vshrl.u32 %v1902, 7
    %v1904 = vsub.s32 %v1901, %v1903
    %v1905 = vrot.slane %v1897, %v1904
    %v1907 = vunpack.c.l.s4 1983009808
    %v1908 = vunpack.c.0.s8 %v1907
    %v1909 = vlaneseq
    %v1910 = vshrl.u32 %v1909, 7
    %v1911 = vsub.s32 %v1908, %v1910
    %v1912 = vrot.slane %v1898, %v1911
    %v1913 = vcombine.low %v1905, %v1912
    %v1916 = vsel %vm144, %v1896, 0.0
    %1917 = vadd.xlane.f32.xlu0 %v1916
    %v1918 = vpop.xlane.xlu0 %1917
    %v1919 = vsel %vm144, %v1913, 0.0
    %1920 = vadd.xlane.f32.xlu0 %v1919
    %v1921 = vpop.xlane.xlu0 %1920
    %v1922 = vmul.f32 %v1918, %v1304
    %v1923 = vmul.f32 %v1921, %v1304
    %v1927 = vunpack.c.l.s4 269488144
    %v1928 = vunpack.c.0.s8 %v1927
    %v1929 = vlaneseq
    %v1930 = vshrl.u32 %v1929, 7
    %v1931 = vsub.s32 %v1928, %v1930
    %v1932 = vrot.slane %v1922, %v1931
    %v1934 = vunpack.c.l.s4 842150450
    %v1935 = vunpack.c.0.s8 %v1934
    %v1936 = vlaneseq
    %v1937 = vshrl.u32 %v1936, 7
    %v1938 = vsub.s32 %v1935, %v1937
    %v1939 = vrot.slane %v1922, %v1938
    %v1941 = vunpack.c.l.s4 1414812756
    %v1942 = vunpack.c.0.s8 %v1941
    %v1943 = vlaneseq
    %v1944 = vshrl.u32 %v1943, 7
    %v1945 = vsub.s32 %v1942, %v1944
    %v1946 = vrot.slane %v1922, %v1945
    %v1948 = vunpack.c.l.s4 1987475062
    %v1949 = vunpack.c.0.s8 %v1948
    %v1950 = vlaneseq
    %v1951 = vshrl.u32 %v1950, 7
    %v1952 = vsub.s32 %v1949, %v1951
    %v1953 = vrot.slane %v1922, %v1952
    %v1955 = vunpack.c.l.s4 269488144
    %v1956 = vunpack.c.0.s8 %v1955
    %v1957 = vlaneseq
    %v1958 = vshrl.u32 %v1957, 7
    %v1959 = vsub.s32 %v1956, %v1958
    %v1960 = vrot.slane %v1923, %v1959
    %v1962 = vunpack.c.l.s4 842150450
    %v1963 = vunpack.c.0.s8 %v1962
    %v1964 = vlaneseq
    %v1965 = vshrl.u32 %v1964, 7
    %v1966 = vsub.s32 %v1963, %v1965
    %v1967 = vrot.slane %v1923, %v1966
    %v1969 = vunpack.c.l.s4 1414812756
    %v1970 = vunpack.c.0.s8 %v1969
    %v1971 = vlaneseq
    %v1972 = vshrl.u32 %v1971, 7
    %v1973 = vsub.s32 %v1970, %v1972
    %v1974 = vrot.slane %v1923, %v1973
    %v1976 = vunpack.c.l.s4 1987475062
    %v1977 = vunpack.c.0.s8 %v1976
    %v1978 = vlaneseq
    %v1979 = vshrl.u32 %v1978, 7
    %v1980 = vsub.s32 %v1977, %v1979
    %v1981 = vrot.slane %v1923, %v1980
    %v1990 = vsub.f32 %v1864, %v1932
    %v1991 = vsub.f32 %v1865, %v1939
    %v1992 = vsub.f32 %v1866, %v1946
    %v1993 = vsub.f32 %v1867, %v1953
    %v1994 = vsub.f32 %v1868, %v1960
    %v1995 = vsub.f32 %v1869, %v1967
    %v1996 = vsub.f32 %v1870, %v1974
    %v1997 = vsub.f32 %v1871, %v1981
    %v1998 = vmul.f32 %v1990, %v1990
    %v1999 = vmul.f32 %v1991, %v1991
    %v2000 = vmul.f32 %v1992, %v1992
    %v2001 = vmul.f32 %v1993, %v1993
    %v2002 = vmul.f32 %v1994, %v1994
    %v2003 = vmul.f32 %v1995, %v1995
    %v2004 = vmul.f32 %v1996, %v1996
    %v2005 = vmul.f32 %v1997, %v1997
    %v2014 = vcombine.low %v1998, %v1999
    %v2015 = vcombine.low %v2000, %v2001
    %v2017 = vunpack.c.l.s4 1983009808
    %v2018 = vunpack.c.0.s8 %v2017
    %v2019 = vlaneseq
    %v2020 = vshrl.u32 %v2019, 7
    %v2021 = vsub.s32 %v2018, %v2020
    %v2022 = vrot.slane %v2014, %v2021
    %v2024 = vunpack.c.l.s4 1983009808
    %v2025 = vunpack.c.0.s8 %v2024
    %v2026 = vlaneseq
    %v2027 = vshrl.u32 %v2026, 7
    %v2028 = vsub.s32 %v2025, %v2027
    %v2029 = vrot.slane %v2015, %v2028
    %v2030 = vcombine.low %v2022, %v2029
    %v2031 = vcombine.low %v2002, %v2003
    %v2032 = vcombine.low %v2004, %v2005
    %v2034 = vunpack.c.l.s4 1983009808
    %v2035 = vunpack.c.0.s8 %v2034
    %v2036 = vlaneseq
    %v2037 = vshrl.u32 %v2036, 7
    %v2038 = vsub.s32 %v2035, %v2037
    %v2039 = vrot.slane %v2031, %v2038
    %v2041 = vunpack.c.l.s4 1983009808
    %v2042 = vunpack.c.0.s8 %v2041
    %v2043 = vlaneseq
    %v2044 = vshrl.u32 %v2043, 7
    %v2045 = vsub.s32 %v2042, %v2044
    %v2046 = vrot.slane %v2032, %v2045
    %v2047 = vcombine.low %v2039, %v2046
    %v2050 = vsel %vm144, %v2030, 0.0
    %2051 = vadd.xlane.f32.xlu0 %v2050
    %v2052 = vpop.xlane.xlu0 %2051
    %v2053 = vsel %vm144, %v2047, 0.0
    %2054 = vadd.xlane.f32.xlu0 %v2053
    %v2055 = vpop.xlane.xlu0 %2054
    %v2056 = vmul.f32 %v2052, %v1304
    %v2057 = vmul.f32 %v2055, %v1304
    %v2058 = vadd.f32 %v2056, 1e-05
    %v2059 = vadd.f32 %v2057, 1e-05
    %v2060 = vrsqrt.pop %v2058
    %v2061 = vrsqrt.pop %v2059
    %v2065 = vunpack.c.l.s4 269488144
    %v2066 = vunpack.c.0.s8 %v2065
    %v2067 = vlaneseq
    %v2068 = vshrl.u32 %v2067, 7
    %v2069 = vsub.s32 %v2066, %v2068
    %v2070 = vrot.slane %v2060, %v2069
    %v2072 = vunpack.c.l.s4 842150450
    %v2073 = vunpack.c.0.s8 %v2072
    %v2074 = vlaneseq
    %v2075 = vshrl.u32 %v2074, 7
    %v2076 = vsub.s32 %v2073, %v2075
    %v2077 = vrot.slane %v2060, %v2076
    %v2079 = vunpack.c.l.s4 1414812756
    %v2080 = vunpack.c.0.s8 %v2079
    %v2081 = vlaneseq
    %v2082 = vshrl.u32 %v2081, 7
    %v2083 = vsub.s32 %v2080, %v2082
    %v2084 = vrot.slane %v2060, %v2083
    %v2086 = vunpack.c.l.s4 1987475062
    %v2087 = vunpack.c.0.s8 %v2086
    %v2088 = vlaneseq
    %v2089 = vshrl.u32 %v2088, 7
    %v2090 = vsub.s32 %v2087, %v2089
    %v2091 = vrot.slane %v2060, %v2090
    %v2093 = vunpack.c.l.s4 269488144
    %v2094 = vunpack.c.0.s8 %v2093
    %v2095 = vlaneseq
    %v2096 = vshrl.u32 %v2095, 7
    %v2097 = vsub.s32 %v2094, %v2096
    %v2098 = vrot.slane %v2061, %v2097
    %v2100 = vunpack.c.l.s4 842150450
    %v2101 = vunpack.c.0.s8 %v2100
    %v2102 = vlaneseq
    %v2103 = vshrl.u32 %v2102, 7
    %v2104 = vsub.s32 %v2101, %v2103
    %v2105 = vrot.slane %v2061, %v2104
    %v2107 = vunpack.c.l.s4 1414812756
    %v2108 = vunpack.c.0.s8 %v2107
    %v2109 = vlaneseq
    %v2110 = vshrl.u32 %v2109, 7
    %v2111 = vsub.s32 %v2108, %v2110
    %v2112 = vrot.slane %v2061, %v2111
    %v2114 = vunpack.c.l.s4 1987475062
    %v2115 = vunpack.c.0.s8 %v2114
    %v2116 = vlaneseq
    %v2117 = vshrl.u32 %v2116, 7
    %v2118 = vsub.s32 %v2115, %v2117
    %v2119 = vrot.slane %v2061, %v2118
    %v2128 = vmul.f32 %v1990, %v2070
    %v2129 = vmul.f32 %v1991, %v2077
    %v2130 = vmul.f32 %v1992, %v2084
    %v2131 = vmul.f32 %v1993, %v2091
    %v2132 = vmul.f32 %v1994, %v2098
    %v2133 = vmul.f32 %v1995, %v2105
    %v2134 = vmul.f32 %v1996, %v2112
    %v2135 = vmul.f32 %v1997, %v2119
    %v2136 = vlaneseq
    %v2137 = vshrl.u32 %v2136, 7
    %v2138 = vsub.s32 3, %v2137
    %v2139 = vrot.slane %v1112, %v2138
    %v2141 = vcombine.high %v2139, %v2139
    %v2143 = vunpack.c.l.s4 1983009808
    %v2144 = vunpack.c.0.s8 %v2143
    %v2145 = vlaneseq
    %v2146 = vshrl.u32 %v2145, 7
    %v2147 = vsub.s32 %v2144, %v2146
    %v2148 = vrot.slane %v2139, %v2147
    %v2150 = vunpack.c.l.s4 1983009808
    %v2151 = vunpack.c.0.s8 %v2150
    %v2152 = vlaneseq
    %v2153 = vshrl.u32 %v2152, 7
    %v2154 = vsub.s32 %v2151, %v2153
    %v2155 = vrot.slane %v2141, %v2154
    %v2156 = vcombine.high %v2148, %v2148
    %v2157 = vcombine.high %v2155, %v2155
    %v2162 = vmul.f32 %v2128, %v2148
    %v2163 = vmul.f32 %v2129, %v2156
    %v2164 = vmul.f32 %v2130, %v2155
    %v2165 = vmul.f32 %v2131, %v2157
    %v2166 = vmul.f32 %v2132, %v2148
    %v2167 = vmul.f32 %v2133, %v2156
    %v2168 = vmul.f32 %v2134, %v2155
    %v2169 = vmul.f32 %v2135, %v2157
    %v2170 = vlaneseq
    %v2171 = vshrl.u32 %v2170, 7
    %v2172 = vsub.s32 4, %v2171
    %v2173 = vrot.slane %v1112, %v2172
    %v2175 = vcombine.high %v2173, %v2173
    %v2177 = vunpack.c.l.s4 1983009808
    %v2178 = vunpack.c.0.s8 %v2177
    %v2179 = vlaneseq
    %v2180 = vshrl.u32 %v2179, 7
    %v2181 = vsub.s32 %v2178, %v2180
    %v2182 = vrot.slane %v2173, %v2181
    %v2184 = vunpack.c.l.s4 1983009808
    %v2185 = vunpack.c.0.s8 %v2184
    %v2186 = vlaneseq
    %v2187 = vshrl.u32 %v2186, 7
    %v2188 = vsub.s32 %v2185, %v2187
    %v2189 = vrot.slane %v2175, %v2188
    %v2190 = vcombine.high %v2182, %v2182
    %v2191 = vcombine.high %v2189, %v2189
    %v2196 = vadd.f32 %v2162, %v2182
    %v2197 = vadd.f32 %v2163, %v2190
    %v2198 = vadd.f32 %v2164, %v2189
    %v2199 = vadd.f32 %v2165, %v2191
    %v2200 = vadd.f32 %v2166, %v2182
    %v2201 = vadd.f32 %v2167, %v2190
    %v2202 = vadd.f32 %v2168, %v2189
    %v2203 = vadd.f32 %v2169, %v2191
    %vm2204 = vcmask 254976
    %2205 = vst.msk [vmem:[#allocation8] sm:$0x3] %vm2204, %v2196
    %2206 = vst.msk [vmem:[#allocation8 + $0x2] sm:$0x3] %vm2204, %v2197
    %2207 = vst.msk [vmem:[#allocation8 + $0x4] sm:$0x3] %vm2204, %v2198
    %2208 = vst.msk [vmem:[#allocation8 + $0x6] sm:$0x3] %vm2204, %v2199
    %2209 = vst.msk [vmem:[#allocation8 + $0x8] sm:$0x3] %vm2204, %v2200
    %2210 = vst.msk [vmem:[#allocation8 + $0xa] sm:$0x3] %vm2204, %v2201
    %2211 = vst.msk [vmem:[#allocation8 + $0xc] sm:$0x3] %vm2204, %v2202
    %2212 = vst.msk [vmem:[#allocation8 + $0xe] sm:$0x3] %vm2204, %v2203
    // Predicated region
    $region50: #{bart_encoder_layer.1} parent=1 // pred_check
      _
    $region51: #{bart_encoder_layer.1} parent=1 // pred_check_branch
      %2214 = sbr.rel (0) target = $region53
    $region52: #{bart_encoder_layer.1} parent=1 // pred_region
      %s2216 = ssub.s32 256, 256
      %2217 = vsyncadd [#allocation4], %s2216
      %s2218 = sshll.u32 [#allocation8], 4
      %s2219 = int_to_ptr.vmem [resolvable:$true] %s2218
      %2224 = dma.vmem_to_hbm [thread:$0]  %s2219, 256, %s9, [#allocation4], 32, 32, 2
    $region53: #{bart_encoder_layer.1} parent=1 // pred_fallthru
      _
    // Predicated region
    $region54: #{bart_encoder_layer.1} parent=1 // pred_check
      _
    $region55: #{bart_encoder_layer.1} parent=1 // pred_check_branch
      %2226 = sbr.rel (0) target = $region57
    $region56: #{bart_encoder_layer.1} parent=1 // pred_region
      %2227 = dma.done [#allocation4], 256
    $region57: #{bart_encoder_layer.1} parent=1 // pred_fallthru
      _
    %2228 = vsyncpa [#allocation3], 1
    %2229 = vsyncpa [#allocation6], 1
    %2230 = vsyncpa [#allocation4], 1

</llo_original>
